<compile_context>
chip_gen: v6e
topology: v6e:2x2x1
jax: 0.10.0
libtpu: 0.0.40
codegen_flags: <defaults>
</compile_context>

<pallas_src>
import jax
import jax.numpy as jnp
import numpy as np
from jax.experimental import pallas as pl
from jax.experimental.pallas import tpu as pltpu

# bf16 weights everywhere; matmul accumulation stays f32 via preferred_element_type.
# (Set to jnp.float32 for strict-f32 numerics.)
WEIGHT_DTYPE = jnp.bfloat16


def _round_up(x, m):
    return (x + m - 1) // m * m


def _vmem_limit_bytes():
    # Generation-aware VMEM budget: ~3/4 of physical (v5e/v6e: 128 MiB, v7x: 64 MiB),
    # well above the scoped defaults (16/32 MiB) so larger time blocks don't hit the cap.
    try:
        cap = int(pltpu.get_tpu_info().vmem_capacity_bytes)
    except Exception:
        cap = 64 * 1024 * 1024
    return int(min(cap * 3 // 4, 96 * 1024 * 1024))


def _pack_gates(w):
    """Repack the 4H gate axis from PyTorch order (i,f,g,o) to (i,f,o,g)."""
    H = w.shape[-1] // 4
    return jnp.concatenate(
        [w[..., 0 * H:1 * H], w[..., 1 * H:2 * H], w[..., 3 * H:4 * H], w[..., 2 * H:3 * H]],
        axis=-1)


# -------------------------- Fused LSTM-LM kernel ------------------------------
def _make_fused_kernel(*, L, Tb, Bp, H, T_real, T_pad, fuse_decoder):
    needs_mask = (T_pad != T_real)   # static: only emit tail-masking code when needed

    def kernel(*refs):
        # ---- unpack (inputs..., outputs..., scratch...) ----
        pos = 0
        x_ref = refs[pos]; pos += 1
        wih_refs, whh_refs, b_refs = [], [], []
        for _ in range(L):
            wih_refs.append(refs[pos + 0])
            whh_refs.append(refs[pos + 1])
            b_refs.append(refs[pos + 2])
            pos += 3
        if fuse_decoder:
            dec_w_ref, dec_b_ref = refs[pos], refs[pos + 1]
            pos += 2
        h0_ref, c0_ref = refs[pos], refs[pos + 1]; pos += 2
        out_ref, hN_ref, cN_ref = refs[pos], refs[pos + 1], refs[pos + 2]; pos += 3
        gx_ref = refs[pos]; pos += 1
        y_ref = refs[pos] if fuse_decoder else out_ref   # per-step top-layer writes

        pid = pl.program_id(0)

        @pl.when(pid == 0)
        def _init():                       # hN/cN are the resident state accumulators
            hN_ref[...] = h0_ref[...]
            cN_ref[...] = c0_ref[...]

        mx = wih_refs[0].dtype             # bf16 matmul operands, f32 accumulation

        # Hoisted layer-0 input projection: one (Tb*Bp, E) x (E, 4H) MXU matmul per time
        # block, parked in VMEM so it doesn't pin ~Tb vregs across the unrolled loop.
        gx_ref[...] = (jnp.dot(x_ref[...].astype(mx), wih_refs[0][...],
                               preferred_element_type=jnp.float32)
                       + b_refs[0][...])

        # Block-invariant weight loads / bias broadcasts, hoisted out of the step loop.
        whh = [whh_refs[l][...] for l in range(L)]
        wih = [None] + [wih_refs[l][...] for l in range(1, L)]
        bias = [None] + [jnp.broadcast_to(b_refs[l][...], (Bp, 4 * H)) for l in range(1, L)]

        # Recurrent state: from the resident hN/cN blocks (h0/c0 at block 0).
        h = [hN_ref[l] for l in range(L)]
        c = [cN_ref[l] for l in range(L)]

        # Cross-layer wavefront: wave w runs step (layer l, t = w - l).  All steps of one
        # wave depend only on the previous wave, so their MXU->EUP chains interleave.
        for w in range(Tb + L - 1):
            h_prev = list(h)               # snapshot: layer l reads layer l-1's prior-wave h
            for l in range(L):
                t = w - l
                if t < 0 or t >= Tb:
                    continue
                if l == 0:
                    g = gx_ref[pl.ds(t * Bp, Bp), :] + jnp.dot(
                        h_prev[0].astype(mx), whh[0],
                        preferred_element_type=jnp.float32)
                else:
                    g = (jnp.dot(h_prev[l - 1].astype(mx), wih[l],
                                 preferred_element_type=jnp.float32)
                         + jnp.dot(h_prev[l].astype(mx), whh[l],
                                   preferred_element_type=jnp.float32)
                         + bias[l])
                # Gates packed (i, f, o | g): one 3H-wide sigmoid + one H-wide tanh.
                sig = jax.nn.sigmoid(g[:, : 3 * H])
                g_g = jnp.tanh(g[:, 3 * H:])
                i_g = sig[:, 0 * H:1 * H]
                f_g = sig[:, 1 * H:2 * H]
                o_g = sig[:, 2 * H:3 * H]
                c_new = f_g * c[l] + i_g * g_g
                h_new = o_g * jnp.tanh(c_new)
                if needs_mask:             # only the padded tail steps of the last block
                    valid = (pid * Tb + t) < T_real
                    c_new = jnp.where(valid, c_new, c[l])
                    h_new = jnp.where(valid, h_new, h[l])
                c[l] = c_new
                h[l] = h_new
                if l == L - 1:
                    y_ref[pl.ds(t * Bp, Bp), :] = h_new.astype(y_ref.dtype)

        # One state writeback per time block (not per timestep).
        for l in range(L):
            hN_ref[l] = h[l]
            cN_ref[l] = c[l]

        if fuse_decoder:
            # Fused decoder: one lane-dense (Tb*Bp, H) x (H, O_pad) matmul + store per block.
            out_ref[...] = (jnp.dot(y_ref[...].astype(mx), dec_w_ref[...],
                                    preferred_element_type=jnp.float32)
                            + dec_b_ref[...]).astype(out_ref.dtype)

    return kernel


def _fused_lstm_lm(x2, lstm_params, dec_wT, dec_b, h0s, c0s, *,
                   L, H, E, Bp, Tb, T_real, T_pad, O_pad, fuse_decoder):
    out_cols = O_pad if fuse_decoder else H

    def invariant_spec(shape):
        # Constant index map + single buffer: loop-invariant across the time-block grid,
        # so a second pipeline buffer would be pure VMEM waste.
        return pl.BlockSpec(shape, lambda *_: (0,) * len(shape),
                            pipeline_mode=pl.Buffered(1))

    in_specs = [pl.BlockSpec((Tb * Bp, E), lambda t: (t, 0))]      # x time-block slab
    inputs = [x2]
    for p in lstm_params:
        for name in ("w_ihT", "w_hhT", "b"):
            in_specs.append(invariant_spec(p[name].shape))
            inputs.append(p[name])
    if fuse_decoder:
        in_specs += [invariant_spec(dec_wT.shape), invariant_spec(dec_b.shape)]
        inputs += [dec_wT, dec_b]
    h0_idx = len(inputs)
    in_specs += [invariant_spec(h0s.shape), invariant_spec(c0s.shape)]
    inputs += [h0s, c0s]

    out_shape = (
        jax.ShapeDtypeStruct((T_pad * Bp, out_cols), jnp.float32),  # decoded (or top-layer y)
        jax.ShapeDtypeStruct((L, Bp, H), jnp.float32),              # h_T
        jax.ShapeDtypeStruct((L, Bp, H), jnp.float32),              # c_T
    )
    out_specs = (
        pl.BlockSpec((Tb * Bp, out_cols), lambda t: (t, 0)),
        pl.BlockSpec((L, Bp, H), lambda t: (0, 0, 0)),              # resident accumulator
        pl.BlockSpec((L, Bp, H), lambda t: (0, 0, 0)),              # resident accumulator
    )

    scratch = [pltpu.VMEM((Tb * Bp, 4 * H), jnp.float32)]           # hoisted layer-0 gx
    if fuse_decoder:
        scratch.append(pltpu.VMEM((Tb * Bp, H), jnp.float32))       # top-layer y -> decoder

    kernel = _make_fused_kernel(L=L, Tb=Tb, Bp=Bp, H=H, T_real=T_real, T_pad=T_pad,
                                fuse_decoder=fuse_decoder)

    return pl.pallas_call(
        kernel,
        out_shape=out_shape,
        grid_spec=pltpu.PrefetchScalarGridSpec(
            num_scalar_prefetch=0,
            grid=(T_pad // Tb,),
            in_specs=in_specs,
            out_specs=out_specs,
            scratch_shapes=scratch,
        ),
        # Donate the h0/c0 HBM buffers to hN/cN (same shape/dtype; read once at block 0,
        # written back once at the end of the grid -> no hazard).
        input_output_aliases={h0_idx: 1, h0_idx + 1: 2},
        compiler_params=pltpu.CompilerParams(
            dimension_semantics=("arbitrary",),     # serial recurrence over time blocks
            vmem_limit_bytes=_vmem_limit_bytes()),
    )(*inputs)


# ---------------- Standalone decoder (large-vocab fallback only) --------------
def _linear_kernel(x_ref, w_ref, b_ref, o_ref):
    o_ref[...] = (jnp.dot(x_ref[...].astype(w_ref.dtype), w_ref[...],
                          preferred_element_type=jnp.float32)
                  + b_ref[...]).astype(o_ref.dtype)


def linear(x2d, wT, b):
    """Tiled y = x2d @ wT + b.  Grid = (vocab tiles OUTER, row tiles INNER) so each
    (K, 128) weight tile is DMA'd exactly once (weight HBM traffic = K*O); the activation
    row tile is the cheap re-read operand.  Vocab padded to 128 for lane-dense stores."""
    N, K = x2d.shape
    O = wT.shape[1]
    O_pad = _round_up(O, 128)
    tn = 256 if N >= 256 else _round_up(N, 8)
    N_pad = _round_up(N, tn)
    to = 128

    x_p = jnp.pad(x2d, ((0, N_pad - N), (0, 0))) if N_pad != N else x2d
    w_p = jnp.pad(wT, ((0, 0), (0, O_pad - O))) if O_pad != O else wT
    b_p = jnp.pad(b, ((0, 0), (0, O_pad - O))) if O_pad != O else b

    out = pl.pallas_call(
        _linear_kernel,
        out_shape=jax.ShapeDtypeStruct((N_pad, O_pad), jnp.float32),
        grid_spec=pltpu.PrefetchScalarGridSpec(
            num_scalar_prefetch=0,
            grid=(O_pad // to, N_pad // tn),        # vocab outer, rows inner
            in_specs=[
                pl.BlockSpec((tn, K), lambda j, i: (i, 0)),
                pl.BlockSpec((K, to), lambda j, i: (0, j)),
                pl.BlockSpec((1, to), lambda j, i: (0, j)),
            ],
            out_specs=pl.BlockSpec((tn, to), lambda j, i: (i, j)),
        ),
        compiler_params=pltpu.CompilerParams(
            dimension_semantics=("parallel", "parallel"),
            vmem_limit_bytes=_vmem_limit_bytes()),
    )(x_p, w_p, b_p)
    return out[:N, :O]


# ------------------------------- Full forward --------------------------------
def rnn_model_forward(params, tokens, hidden, *, time_block=16,
                      fuse_decoder_max_bytes=4 * 1024 * 1024):
    """Mirrors RNNModel.forward (rnn_type='LSTM'): emb = encoder(input);
    out, hid = LSTM(emb, hidden); decoded = decoder(out).  Dropout = 0 -> identity."""
    h0, c0 = hidden                                   # each (L, B, H)
    T, B = tokens.shape
    L, _, H = h0.shape
    E = params["embedding"].shape[1]
    O = params["dec_wT"].shape[1]
    O_pad = _round_up(O, 128)

    # Embedding lookup stays as XLA glue (pure gather, nothing to fuse).
    emb = jnp.take(params["embedding"], tokens, axis=0)          # (T, B, E)

    # Pad batch once to the f32 sublane width (8); rows are independent in an LSTM and
    # nothing below reduces over batch, so padded rows never influence real ones.
    Bp = max(_round_up(B, 8), 8)
    # Time blocking: pad T up to a multiple of Tb and mask the tail steps in-kernel
    # (avoids the Tb->1 perf cliff for awkward/prime T).
    Tb = min(time_block, T)
    T_pad = _round_up(T, Tb)

    emb = jnp.pad(emb, ((0, T_pad - T), (0, Bp - B), (0, 0)))
    x2 = emb.reshape(T_pad * Bp, E)                              # 2D time-major slab
    h0p = jnp.pad(h0, ((0, 0), (0, Bp - B), (0, 0)))
    c0p = jnp.pad(c0, ((0, 0), (0, Bp - B), (0, 0)))

    dec_wT, dec_b = params["dec_wT"], params["dec_b"]
    fuse_decoder = (H * O_pad * dec_wT.dtype.itemsize) <= fuse_decoder_max_bytes
    if fuse_decoder:
        dec_w_p = jnp.pad(dec_wT, ((0, 0), (0, O_pad - O))) if O_pad != O else dec_wT
        dec_b_p = jnp.pad(dec_b, ((0, 0), (0, O_pad - O))) if O_pad != O else dec_b
    else:
        dec_w_p = dec_b_p = None

    out, hN, cN = _fused_lstm_lm(
        x2, params["lstm"], dec_w_p, dec_b_p, h0p, c0p,
        L=L, H=H, E=E, Bp=Bp, Tb=Tb, T_real=T, T_pad=T_pad,
        O_pad=O_pad, fuse_decoder=fuse_decoder)

    if fuse_decoder:
        decoded = out.reshape(T_pad, Bp, O_pad)[:T, :B, :O]
    else:
        decoded = linear(out[: T * Bp], dec_wT, dec_b).reshape(T, Bp, O)[:, :B, :]
    return decoded, (hN[:, :B], cN[:, :B])


# --------------------------- Pure-JAX reference check -------------------------
def _ref_forward(params, tokens, hidden):
    """Reference with the SAME numerics as the kernel: bf16 matmul operands, f32
    accumulation, packed (i,f,o|g) gate order (a consistent column permutation of the
    PyTorch LSTM, hence identical semantics)."""
    h0, c0 = hidden
    x = jnp.take(params["embedding"], tokens, axis=0)
    h_out, c_out = [], []
    for l, p in enumerate(params["lstm"]):
        H = p["w_hhT"].shape[0]
        wih, whh, bias = p["w_ihT"], p["w_hhT"], p["b"][0]
        mx = wih.dtype

        def step(carry, x_t):
            h, c = carry
            g = (jnp.dot(x_t.astype(mx), wih, preferred_element_type=jnp.float32)
                 + jnp.dot(h.astype(mx), whh, preferred_element_type=jnp.float32)
                 + bias)
            sig = jax.nn.sigmoid(g[:, : 3 * H])
            gg = jnp.tanh(g[:, 3 * H:])
            i, f, o = sig[:, :H], sig[:, H:2 * H], sig[:, 2 * H:3 * H]
            c = f * c + i * gg
            h = o * jnp.tanh(c)
            return (h, c), h

        (hN, cN), y = jax.lax.scan(step, (h0[l], c0[l]), x)
        h_out.append(hN)
        c_out.append(cN)
        x = y
    T, B, H = x.shape
    mx = params["dec_wT"].dtype
    dec = (jnp.dot(x.reshape(T * B, H).astype(mx), params["dec_wT"],
                   preferred_element_type=jnp.float32)
           + params["dec_b"]).reshape(T, B, -1)
    return dec, (jnp.stack(h_out), jnp.stack(c_out))


# ----------------------------------- Main -------------------------------------
if __name__ == "__main__":
    VOCAB = 50
    E = 32          # encoding_size
    H = 32          # hidden_size   (4H = 128 -> lane-aligned gates)
    O = 50          # output_size
    L = 2           # num_layers
    T = 8           # sequence length
    B = 2           # batch size

    key = jax.random.PRNGKey(0)
    keys = jax.random.split(key, 4 + 4 * L)

    # Encoder: embedding table of pre-trained word vectors (synthetic, deterministic).
    embedding = jax.random.normal(keys[0], (VOCAB, E), dtype=jnp.float32)

    # LSTM parameters, PyTorch-style uniform(-1/sqrt(H), 1/sqrt(H)), pre-transposed and
    # gate-repacked to (i, f, o, g).
    bound = 1.0 / np.sqrt(H)
    lstm_params = []
    for l in range(L):
        e_in = E if l == 0 else H
        k = keys[4 + 4 * l: 8 + 4 * l]
        w_ih = jax.random.uniform(k[0], (4 * H, e_in), jnp.float32, -bound, bound)
        w_hh = jax.random.uniform(k[1], (4 * H, H), jnp.float32, -bound, bound)
        b_ih = jax.random.uniform(k[2], (4 * H,), jnp.float32, -bound, bound)
        b_hh = jax.random.uniform(k[3], (4 * H,), jnp.float32, -bound, bound)
        lstm_params.append(dict(
            w_ihT=_pack_gates(w_ih.T).astype(WEIGHT_DTYPE),
            w_hhT=_pack_gates(w_hh.T).astype(WEIGHT_DTYPE),
            b=_pack_gates((b_ih + b_hh)[None, :])))     # bias stays f32

    # Decoder: kaiming_normal_ weight (std = sqrt(2 / fan_in)), zero bias.
    dec_w = jax.random.normal(keys[1], (O, H), jnp.float32) * np.sqrt(2.0 / H)
    dec_b = jnp.zeros((1, O), jnp.float32)

    params = dict(embedding=embedding, lstm=lstm_params,
                  dec_wT=dec_w.T.astype(WEIGHT_DTYPE), dec_b=dec_b)

    tokens = jax.random.randint(keys[2], (T, B), 0, VOCAB, dtype=jnp.int32)
    hidden0 = (jnp.zeros((L, B, H), jnp.float32),       # init_hidden for LSTM
               jnp.zeros((L, B, H), jnp.float32))

    decoded, (hN, cN) = rnn_model_forward(params, tokens, hidden0)
    jax.block_until_ready((decoded, hN, cN))

    # Sanity check against a pure-JAX reference (same math, same bf16 casts).
    ref_dec, (ref_h, ref_c) = _ref_forward(params, tokens, hidden0)
    assert decoded.shape == (T, B, O) and hN.shape == (L, B, H) and cN.shape == (L, B, H)
    np.testing.assert_allclose(np.asarray(decoded), np.asarray(ref_dec), atol=2e-3, rtol=2e-3)
    np.testing.assert_allclose(np.asarray(hN), np.asarray(ref_h), atol=2e-3, rtol=2e-3)
    np.testing.assert_allclose(np.asarray(cN), np.asarray(ref_c), atol=2e-3, rtol=2e-3)

    print("KERNEL_OK")
</pallas_src>

<mosaic_0001>
module attributes {stable_mosaic.version = 11 : i64} {
  func.func @kernel(%arg0: i32, %arg1: memref<64x32xf32, #tpu.memory_space<vmem>>, %arg2: memref<32x128xbf16, #tpu.memory_space<vmem>>, %arg3: memref<32x128xbf16, #tpu.memory_space<vmem>>, %arg4: memref<1x128xf32, #tpu.memory_space<vmem>>, %arg5: memref<32x128xbf16, #tpu.memory_space<vmem>>, %arg6: memref<32x128xbf16, #tpu.memory_space<vmem>>, %arg7: memref<1x128xf32, #tpu.memory_space<vmem>>, %arg8: memref<32x128xbf16, #tpu.memory_space<vmem>>, %arg9: memref<1x128xf32, #tpu.memory_space<vmem>>, %arg10: memref<2x8x32xf32, #tpu.memory_space<vmem>>, %arg11: memref<2x8x32xf32, #tpu.memory_space<vmem>>, %arg12: memref<64x128xf32, #tpu.memory_space<vmem>>, %arg13: memref<2x8x32xf32, #tpu.memory_space<vmem>>, %arg14: memref<2x8x32xf32, #tpu.memory_space<vmem>>, %arg15: memref<64x128xf32, #tpu.memory_space<vmem>>, %arg16: memref<64x32xf32, #tpu.memory_space<vmem>>) attributes {dimension_semantics = [#tpu.dimension_semantics<arbitrary>], iteration_bounds = array<i64: 1>, scalar_prefetch = 0 : i64, scratch_operands = 2 : i64, tpu.core_type = #tpu.core_type<tc>, window_params = [{transform_indices = @transform_0, window_bounds = array<i64: 64, 32>}, {pipeline_mode = #tpu.pipeline_mode<synchronous>, transform_indices = @transform_1, window_bounds = array<i64: 32, 128>}, {pipeline_mode = #tpu.pipeline_mode<synchronous>, transform_indices = @transform_2, window_bounds = array<i64: 32, 128>}, {pipeline_mode = #tpu.pipeline_mode<synchronous>, transform_indices = @transform_3, window_bounds = array<i64: 1, 128>}, {pipeline_mode = #tpu.pipeline_mode<synchronous>, transform_indices = @transform_4, window_bounds = array<i64: 32, 128>}, {pipeline_mode = #tpu.pipeline_mode<synchronous>, transform_indices = @transform_5, window_bounds = array<i64: 32, 128>}, {pipeline_mode = #tpu.pipeline_mode<synchronous>, transform_indices = @transform_6, window_bounds = array<i64: 1, 128>}, {pipeline_mode = #tpu.pipeline_mode<synchronous>, transform_indices = @transform_7, window_bounds = array<i64: 32, 128>}, {pipeline_mode = #tpu.pipeline_mode<synchronous>, transform_indices = @transform_8, window_bounds = array<i64: 1, 128>}, {pipeline_mode = #tpu.pipeline_mode<synchronous>, transform_indices = @transform_9, window_bounds = array<i64: 2, 8, 32>}, {pipeline_mode = #tpu.pipeline_mode<synchronous>, transform_indices = @transform_10, window_bounds = array<i64: 2, 8, 32>}, {transform_indices = @transform_11, window_bounds = array<i64: 64, 128>}, {pipeline_mode = #tpu.pipeline_mode<synchronous>, transform_indices = @transform_12, window_bounds = array<i64: 2, 8, 32>}, {pipeline_mode = #tpu.pipeline_mode<synchronous>, transform_indices = @transform_13, window_bounds = array<i64: 2, 8, 32>}]} {
    %c0_i32 = arith.constant 0 : i32
    %0 = arith.cmpi eq, %arg0, %c0_i32 : i32
    %1 = arith.extui %0 : i1 to i32
    %c0_i32_0 = arith.constant 0 : i32
    %2 = arith.cmpi ne, %1, %c0_i32_0 : i32
    scf.if %2 {
      %c0_113 = arith.constant 0 : index
      %c0_114 = arith.constant 0 : index
      %c0_115 = arith.constant 0 : index
      %389 = vector.load %arg10[%c0_113, %c0_114, %c0_115] : memref<2x8x32xf32, #tpu.memory_space<vmem>>, vector<2x8x32xf32>
      %c0_116 = arith.constant 0 : index
      %c0_117 = arith.constant 0 : index
      %c0_118 = arith.constant 0 : index
      %390 = vector.load %arg13[%c0_116, %c0_117, %c0_118] : memref<2x8x32xf32, #tpu.memory_space<vmem>>, vector<2x8x32xf32>
      tpu.vector_store %arg13[%c0_116, %c0_117, %c0_118], %389 {strides = array<i32>} : memref<2x8x32xf32, #tpu.memory_space<vmem>>, vector<2x8x32xf32>,
      %c0_119 = arith.constant 0 : index
      %c0_120 = arith.constant 0 : index
      %c0_121 = arith.constant 0 : index
      %391 = vector.load %arg11[%c0_119, %c0_120, %c0_121] : memref<2x8x32xf32, #tpu.memory_space<vmem>>, vector<2x8x32xf32>
      %c0_122 = arith.constant 0 : index
      %c0_123 = arith.constant 0 : index
      %c0_124 = arith.constant 0 : index
      %392 = vector.load %arg14[%c0_122, %c0_123, %c0_124] : memref<2x8x32xf32, #tpu.memory_space<vmem>>, vector<2x8x32xf32>
      tpu.vector_store %arg14[%c0_122, %c0_123, %c0_124], %391 {strides = array<i32>} : memref<2x8x32xf32, #tpu.memory_space<vmem>>, vector<2x8x32xf32>,
    } else {
    }
    %c0 = arith.constant 0 : index
    %c0_1 = arith.constant 0 : index
    %3 = vector.load %arg1[%c0, %c0_1] : memref<64x32xf32, #tpu.memory_space<vmem>>, vector<64x32xf32>
    %4 = arith.truncf %3 : vector<64x32xf32> to vector<64x32xbf16>
    %c0_2 = arith.constant 0 : index
    %c0_3 = arith.constant 0 : index
    %5 = vector.load %arg2[%c0_2, %c0_3] : memref<32x128xbf16, #tpu.memory_space<vmem>>, vector<32x128xbf16>
    %cst = arith.constant dense<0.000000e+00> : vector<64x128xf32>
    %6 = tpu.matmul %4, %5, %cst {dimension_numbers = #tpu.dot_dimension_numbers<[1], [0], [0], [1], [0, 0, 1, 1], [], []>} : vector<64x32xbf16>, vector<32x128xbf16>, vector<64x128xf32> -> vector<64x128xf32>
    %c0_4 = arith.constant 0 : index
    %c0_5 = arith.constant 0 : index
    %7 = vector.load %arg4[%c0_4, %c0_5] : memref<1x128xf32, #tpu.memory_space<vmem>>, vector<1x128xf32>
    %8 = vector.broadcast %7 : vector<1x128xf32> to vector<64x128xf32>
    %9 = arith.addf %6, %8 : vector<64x128xf32>
    %c0_6 = arith.constant 0 : index
    %c0_7 = arith.constant 0 : index
    %10 = vector.load %arg15[%c0_6, %c0_7] : memref<64x128xf32, #tpu.memory_space<vmem>>, vector<64x128xf32>
    tpu.vector_store %arg15[%c0_6, %c0_7], %9 {strides = array<i32>} : memref<64x128xf32, #tpu.memory_space<vmem>>, vector<64x128xf32>,
    %c0_8 = arith.constant 0 : index
    %c0_9 = arith.constant 0 : index
    %11 = vector.load %arg3[%c0_8, %c0_9] : memref<32x128xbf16, #tpu.memory_space<vmem>>, vector<32x128xbf16>
    %c0_10 = arith.constant 0 : index
    %c0_11 = arith.constant 0 : index
    %12 = vector.load %arg6[%c0_10, %c0_11] : memref<32x128xbf16, #tpu.memory_space<vmem>>, vector<32x128xbf16>
    %c0_12 = arith.constant 0 : index
    %c0_13 = arith.constant 0 : index
    %13 = vector.load %arg5[%c0_12, %c0_13] : memref<32x128xbf16, #tpu.memory_space<vmem>>, vector<32x128xbf16>
    %c0_14 = arith.constant 0 : index
    %c0_15 = arith.constant 0 : index
    %14 = vector.load %arg7[%c0_14, %c0_15] : memref<1x128xf32, #tpu.memory_space<vmem>>, vector<1x128xf32>
    %15 = vector.shape_cast %14 : vector<1x128xf32> to vector<1x128xf32>
    %16 = vector.broadcast %15 : vector<1x128xf32> to vector<8x128xf32>
    %c0_16 = arith.constant 0 : index
    %c0_17 = arith.constant 0 : index
    %c0_18 = arith.constant 0 : index
    %17 = vector.load %arg13[%c0_16, %c0_17, %c0_18] : memref<2x8x32xf32, #tpu.memory_space<vmem>>, vector<1x8x32xf32>
    %18 = vector.shape_cast %17 : vector<1x8x32xf32> to vector<8x32xf32>
    %c1 = arith.constant 1 : index
    %c0_19 = arith.constant 0 : index
    %c0_20 = arith.constant 0 : index
    %19 = vector.load %arg13[%c1, %c0_19, %c0_20] : memref<2x8x32xf32, #tpu.memory_space<vmem>>, vector<1x8x32xf32>
    %20 = vector.shape_cast %19 : vector<1x8x32xf32> to vector<8x32xf32>
    %c0_21 = arith.constant 0 : index
    %c0_22 = arith.constant 0 : index
    %c0_23 = arith.constant 0 : index
    %21 = vector.load %arg14[%c0_21, %c0_22, %c0_23] : memref<2x8x32xf32, #tpu.memory_space<vmem>>, vector<1x8x32xf32>
    %22 = vector.shape_cast %21 : vector<1x8x32xf32> to vector<8x32xf32>
    %c1_24 = arith.constant 1 : index
    %c0_25 = arith.constant 0 : index
    %c0_26 = arith.constant 0 : index
    %23 = vector.load %arg14[%c1_24, %c0_25, %c0_26] : memref<2x8x32xf32, #tpu.memory_space<vmem>>, vector<1x8x32xf32>
    %24 = vector.shape_cast %23 : vector<1x8x32xf32> to vector<8x32xf32>
    %c0_27 = arith.constant 0 : index
    %c0_28 = arith.constant 0 : index
    %25 = vector.load %arg15[%c0_27, %c0_28] : memref<64x128xf32, #tpu.memory_space<vmem>>, vector<8x128xf32>
    %26 = arith.truncf %18 : vector<8x32xf32> to vector<8x32xbf16>
    %cst_29 = arith.constant dense<0.000000e+00> : vector<8x128xf32>
    %27 = tpu.matmul %26, %11, %cst_29 {dimension_numbers = #tpu.dot_dimension_numbers<[1], [0], [0], [1], [0, 0, 1, 1], [], []>} : vector<8x32xbf16>, vector<32x128xbf16>, vector<8x128xf32> -> vector<8x128xf32>
    %28 = arith.addf %25, %27 : vector<8x128xf32>
    %29 = vector.extract_strided_slice %28 {offsets = [0, 0], sizes = [8, 96], strides = [1, 1]} : vector<8x128xf32> to vector<8x96xf32>
    %30 = arith.negf %29 : vector<8x96xf32>
    %31 = math.exp %30 : vector<8x96xf32>
    %cst_30 = arith.constant 1.000000e+00 : f32
    %32 = vector.broadcast %cst_30 : f32 to vector<8x96xf32>
    %33 = arith.addf %32, %31 : vector<8x96xf32>
    %34 = arith.divf %32, %33 : vector<8x96xf32>
    %35 = vector.extract_strided_slice %28 {offsets = [0, 96], sizes = [8, 32], strides = [1, 1]} : vector<8x128xf32> to vector<8x32xf32>
    %36 = math.tanh %35 : vector<8x32xf32>
    %37 = vector.extract_strided_slice %34 {offsets = [0, 0], sizes = [8, 32], strides = [1, 1]} : vector<8x96xf32> to vector<8x32xf32>
    %38 = vector.extract_strided_slice %34 {offsets = [0, 32], sizes = [8, 32], strides = [1, 1]} : vector<8x96xf32> to vector<8x32xf32>
    %39 = vector.extract_strided_slice %34 {offsets = [0, 64], sizes = [8, 32], strides = [1, 1]} : vector<8x96xf32> to vector<8x32xf32>
    %40 = arith.mulf %38, %22 : vector<8x32xf32>
    %41 = arith.mulf %37, %36 : vector<8x32xf32>
    %42 = arith.addf %40, %41 : vector<8x32xf32>
    %43 = math.tanh %42 : vector<8x32xf32>
    %44 = arith.mulf %39, %43 : vector<8x32xf32>
    %c8 = arith.constant 8 : index
    %c0_31 = arith.constant 0 : index
    %45 = vector.load %arg15[%c8, %c0_31] : memref<64x128xf32, #tpu.memory_space<vmem>>, vector<8x128xf32>
    %46 = arith.truncf %44 : vector<8x32xf32> to vector<8x32xbf16>
    %cst_32 = arith.constant dense<0.000000e+00> : vector<8x128xf32>
    %47 = tpu.matmul %46, %11, %cst_32 {dimension_numbers = #tpu.dot_dimension_numbers<[1], [0], [0], [1], [0, 0, 1, 1], [], []>} : vector<8x32xbf16>, vector<32x128xbf16>, vector<8x128xf32> -> vector<8x128xf32>
    %48 = arith.addf %45, %47 : vector<8x128xf32>
    %49 = vector.extract_strided_slice %48 {offsets = [0, 0], sizes = [8, 96], strides = [1, 1]} : vector<8x128xf32> to vector<8x96xf32>
    %50 = arith.negf %49 : vector<8x96xf32>
    %51 = math.exp %50 : vector<8x96xf32>
    %cst_33 = arith.constant 1.000000e+00 : f32
    %52 = vector.broadcast %cst_33 : f32 to vector<8x96xf32>
    %53 = arith.addf %52, %51 : vector<8x96xf32>
    %54 = arith.divf %52, %53 : vector<8x96xf32>
    %55 = vector.extract_strided_slice %48 {offsets = [0, 96], sizes = [8, 32], strides = [1, 1]} : vector<8x128xf32> to vector<8x32xf32>
    %56 = math.tanh %55 : vector<8x32xf32>
    %57 = vector.extract_strided_slice %54 {offsets = [0, 0], sizes = [8, 32], strides = [1, 1]} : vector<8x96xf32> to vector<8x32xf32>
    %58 = vector.extract_strided_slice %54 {offsets = [0, 32], sizes = [8, 32], strides = [1, 1]} : vector<8x96xf32> to vector<8x32xf32>
    %59 = vector.extract_strided_slice %54 {offsets = [0, 64], sizes = [8, 32], strides = [1, 1]} : vector<8x96xf32> to vector<8x32xf32>
    %60 = arith.mulf %58, %42 : vector<8x32xf32>
    %61 = arith.mulf %57, %56 : vector<8x32xf32>
    %62 = arith.addf %60, %61 : vector<8x32xf32>
    %63 = math.tanh %62 : vector<8x32xf32>
    %64 = arith.mulf %59, %63 : vector<8x32xf32>
    %65 = arith.truncf %44 : vector<8x32xf32> to vector<8x32xbf16>
    %cst_34 = arith.constant dense<0.000000e+00> : vector<8x128xf32>
    %66 = tpu.matmul %65, %13, %cst_34 {dimension_numbers = #tpu.dot_dimension_numbers<[1], [0], [0], [1], [0, 0, 1, 1], [], []>} : vector<8x32xbf16>, vector<32x128xbf16>, vector<8x128xf32> -> vector<8x128xf32>
    %67 = arith.truncf %20 : vector<8x32xf32> to vector<8x32xbf16>
    %cst_35 = arith.constant dense<0.000000e+00> : vector<8x128xf32>
    %68 = tpu.matmul %67, %12, %cst_35 {dimension_numbers = #tpu.dot_dimension_numbers<[1], [0], [0], [1], [0, 0, 1, 1], [], []>} : vector<8x32xbf16>, vector<32x128xbf16>, vector<8x128xf32> -> vector<8x128xf32>
    %69 = arith.addf %66, %68 : vector<8x128xf32>
    %70 = arith.addf %69, %16 : vector<8x128xf32>
    %71 = vector.extract_strided_slice %70 {offsets = [0, 0], sizes = [8, 96], strides = [1, 1]} : vector<8x128xf32> to vector<8x96xf32>
    %72 = arith.negf %71 : vector<8x96xf32>
    %73 = math.exp %72 : vector<8x96xf32>
    %cst_36 = arith.constant 1.000000e+00 : f32
    %74 = vector.broadcast %cst_36 : f32 to vector<8x96xf32>
    %75 = arith.addf %74, %73 : vector<8x96xf32>
    %76 = arith.divf %74, %75 : vector<8x96xf32>
    %77 = vector.extract_strided_slice %70 {offsets = [0, 96], sizes = [8, 32], strides = [1, 1]} : vector<8x128xf32> to vector<8x32xf32>
    %78 = math.tanh %77 : vector<8x32xf32>
    %79 = vector.extract_strided_slice %76 {offsets = [0, 0], sizes = [8, 32], strides = [1, 1]} : vector<8x96xf32> to vector<8x32xf32>
    %80 = vector.extract_strided_slice %76 {offsets = [0, 32], sizes = [8, 32], strides = [1, 1]} : vector<8x96xf32> to vector<8x32xf32>
    %81 = vector.extract_strided_slice %76 {offsets = [0, 64], sizes = [8, 32], strides = [1, 1]} : vector<8x96xf32> to vector<8x32xf32>
    %82 = arith.mulf %80, %24 : vector<8x32xf32>
    %83 = arith.mulf %79, %78 : vector<8x32xf32>
    %84 = arith.addf %82, %83 : vector<8x32xf32>
    %85 = math.tanh %84 : vector<8x32xf32>
    %86 = arith.mulf %81, %85 : vector<8x32xf32>
    %c0_37 = arith.constant 0 : index
    %c0_38 = arith.constant 0 : index
    %87 = vector.load %arg16[%c0_37, %c0_38] : memref<64x32xf32, #tpu.memory_space<vmem>>, vector<8x32xf32>
    tpu.vector_store %arg16[%c0_37, %c0_38], %86 {strides = array<i32>} : memref<64x32xf32, #tpu.memory_space<vmem>>, vector<8x32xf32>,
    %c16 = arith.constant 16 : index
    %c0_39 = arith.constant 0 : index
    %88 = vector.load %arg15[%c16, %c0_39] : memref<64x128xf32, #tpu.memory_space<vmem>>, vector<8x128xf32>
    %89 = arith.truncf %64 : vector<8x32xf32> to vector<8x32xbf16>
    %cst_40 = arith.constant dense<0.000000e+00> : vector<8x128xf32>
    %90 = tpu.matmul %89, %11, %cst_40 {dimension_numbers = #tpu.dot_dimension_numbers<[1], [0], [0], [1], [0, 0, 1, 1], [], []>} : vector<8x32xbf16>, vector<32x128xbf16>, vector<8x128xf32> -> vector<8x128xf32>
    %91 = arith.addf %88, %90 : vector<8x128xf32>
    %92 = vector.extract_strided_slice %91 {offsets = [0, 0], sizes = [8, 96], strides = [1, 1]} : vector<8x128xf32> to vector<8x96xf32>
    %93 = arith.negf %92 : vector<8x96xf32>
    %94 = math.exp %93 : vector<8x96xf32>
    %cst_41 = arith.constant 1.000000e+00 : f32
    %95 = vector.broadcast %cst_41 : f32 to vector<8x96xf32>
    %96 = arith.addf %95, %94 : vector<8x96xf32>
    %97 = arith.divf %95, %96 : vector<8x96xf32>
    %98 = vector.extract_strided_slice %91 {offsets = [0, 96], sizes = [8, 32], strides = [1, 1]} : vector<8x128xf32> to vector<8x32xf32>
    %99 = math.tanh %98 : vector<8x32xf32>
    %100 = vector.extract_strided_slice %97 {offsets = [0, 0], sizes = [8, 32], strides = [1, 1]} : vector<8x96xf32> to vector<8x32xf32>
    %101 = vector.extract_strided_slice %97 {offsets = [0, 32], sizes = [8, 32], strides = [1, 1]} : vector<8x96xf32> to vector<8x32xf32>
    %102 = vector.extract_strided_slice %97 {offsets = [0, 64], sizes = [8, 32], strides = [1, 1]} : vector<8x96xf32> to vector<8x32xf32>
    %103 = arith.mulf %101, %62 : vector<8x32xf32>
    %104 = arith.mulf %100, %99 : vector<8x32xf32>
    %105 = arith.addf %103, %104 : vector<8x32xf32>
    %106 = math.tanh %105 : vector<8x32xf32>
    %107 = arith.mulf %102, %106 : vector<8x32xf32>
    %108 = arith.truncf %64 : vector<8x32xf32> to vector<8x32xbf16>
    %cst_42 = arith.constant dense<0.000000e+00> : vector<8x128xf32>
    %109 = tpu.matmul %108, %13, %cst_42 {dimension_numbers = #tpu.dot_dimension_numbers<[1], [0], [0], [1], [0, 0, 1, 1], [], []>} : vector<8x32xbf16>, vector<32x128xbf16>, vector<8x128xf32> -> vector<8x128xf32>
    %110 = arith.truncf %86 : vector<8x32xf32> to vector<8x32xbf16>
    %cst_43 = arith.constant dense<0.000000e+00> : vector<8x128xf32>
    %111 = tpu.matmul %110, %12, %cst_43 {dimension_numbers = #tpu.dot_dimension_numbers<[1], [0], [0], [1], [0, 0, 1, 1], [], []>} : vector<8x32xbf16>, vector<32x128xbf16>, vector<8x128xf32> -> vector<8x128xf32>
    %112 = arith.addf %109, %111 : vector<8x128xf32>
    %113 = arith.addf %112, %16 : vector<8x128xf32>
    %114 = vector.extract_strided_slice %113 {offsets = [0, 0], sizes = [8, 96], strides = [1, 1]} : vector<8x128xf32> to vector<8x96xf32>
    %115 = arith.negf %114 : vector<8x96xf32>
    %116 = math.exp %115 : vector<8x96xf32>
    %cst_44 = arith.constant 1.000000e+00 : f32
    %117 = vector.broadcast %cst_44 : f32 to vector<8x96xf32>
    %118 = arith.addf %117, %116 : vector<8x96xf32>
    %119 = arith.divf %117, %118 : vector<8x96xf32>
    %120 = vector.extract_strided_slice %113 {offsets = [0, 96], sizes = [8, 32], strides = [1, 1]} : vector<8x128xf32> to vector<8x32xf32>
    %121 = math.tanh %120 : vector<8x32xf32>
    %122 = vector.extract_strided_slice %119 {offsets = [0, 0], sizes = [8, 32], strides = [1, 1]} : vector<8x96xf32> to vector<8x32xf32>
    %123 = vector.extract_strided_slice %119 {offsets = [0, 32], sizes = [8, 32], strides = [1, 1]} : vector<8x96xf32> to vector<8x32xf32>
    %124 = vector.extract_strided_slice %119 {offsets = [0, 64], sizes = [8, 32], strides = [1, 1]} : vector<8x96xf32> to vector<8x32xf32>
    %125 = arith.mulf %123, %84 : vector<8x32xf32>
    %126 = arith.mulf %122, %121 : vector<8x32xf32>
    %127 = arith.addf %125, %126 : vector<8x32xf32>
    %128 = math.tanh %127 : vector<8x32xf32>
    %129 = arith.mulf %124, %128 : vector<8x32xf32>
    %c8_45 = arith.constant 8 : index
    %c0_46 = arith.constant 0 : index
    %130 = vector.load %arg16[%c8_45, %c0_46] : memref<64x32xf32, #tpu.memory_space<vmem>>, vector<8x32xf32>
    tpu.vector_store %arg16[%c8_45, %c0_46], %129 {strides = array<i32>} : memref<64x32xf32, #tpu.memory_space<vmem>>, vector<8x32xf32>,
    %c24 = arith.constant 24 : index
    %c0_47 = arith.constant 0 : index
    %131 = vector.load %arg15[%c24, %c0_47] : memref<64x128xf32, #tpu.memory_space<vmem>>, vector<8x128xf32>
    %132 = arith.truncf %107 : vector<8x32xf32> to vector<8x32xbf16>
    %cst_48 = arith.constant dense<0.000000e+00> : vector<8x128xf32>
    %133 = tpu.matmul %132, %11, %cst_48 {dimension_numbers = #tpu.dot_dimension_numbers<[1], [0], [0], [1], [0, 0, 1, 1], [], []>} : vector<8x32xbf16>, vector<32x128xbf16>, vector<8x128xf32> -> vector<8x128xf32>
    %134 = arith.addf %131, %133 : vector<8x128xf32>
    %135 = vector.extract_strided_slice %134 {offsets = [0, 0], sizes = [8, 96], strides = [1, 1]} : vector<8x128xf32> to vector<8x96xf32>
    %136 = arith.negf %135 : vector<8x96xf32>
    %137 = math.exp %136 : vector<8x96xf32>
    %cst_49 = arith.constant 1.000000e+00 : f32
    %138 = vector.broadcast %cst_49 : f32 to vector<8x96xf32>
    %139 = arith.addf %138, %137 : vector<8x96xf32>
    %140 = arith.divf %138, %139 : vector<8x96xf32>
    %141 = vector.extract_strided_slice %134 {offsets = [0, 96], sizes = [8, 32], strides = [1, 1]} : vector<8x128xf32> to vector<8x32xf32>
    %142 = math.tanh %141 : vector<8x32xf32>
    %143 = vector.extract_strided_slice %140 {offsets = [0, 0], sizes = [8, 32], strides = [1, 1]} : vector<8x96xf32> to vector<8x32xf32>
    %144 = vector.extract_strided_slice %140 {offsets = [0, 32], sizes = [8, 32], strides = [1, 1]} : vector<8x96xf32> to vector<8x32xf32>
    %145 = vector.extract_strided_slice %140 {offsets = [0, 64], sizes = [8, 32], strides = [1, 1]} : vector<8x96xf32> to vector<8x32xf32>
    %146 = arith.mulf %144, %105 : vector<8x32xf32>
    %147 = arith.mulf %143, %142 : vector<8x32xf32>
    %148 = arith.addf %146, %147 : vector<8x32xf32>
    %149 = math.tanh %148 : vector<8x32xf32>
    %150 = arith.mulf %145, %149 : vector<8x32xf32>
    %151 = arith.truncf %107 : vector<8x32xf32> to vector<8x32xbf16>
    %cst_50 = arith.constant dense<0.000000e+00> : vector<8x128xf32>
    %152 = tpu.matmul %151, %13, %cst_50 {dimension_numbers = #tpu.dot_dimension_numbers<[1], [0], [0], [1], [0, 0, 1, 1], [], []>} : vector<8x32xbf16>, vector<32x128xbf16>, vector<8x128xf32> -> vector<8x128xf32>
    %153 = arith.truncf %129 : vector<8x32xf32> to vector<8x32xbf16>
    %cst_51 = arith.constant dense<0.000000e+00> : vector<8x128xf32>
    %154 = tpu.matmul %153, %12, %cst_51 {dimension_numbers = #tpu.dot_dimension_numbers<[1], [0], [0], [1], [0, 0, 1, 1], [], []>} : vector<8x32xbf16>, vector<32x128xbf16>, vector<8x128xf32> -> vector<8x128xf32>
    %155 = arith.addf %152, %154 : vector<8x128xf32>
    %156 = arith.addf %155, %16 : vector<8x128xf32>
    %157 = vector.extract_strided_slice %156 {offsets = [0, 0], sizes = [8, 96], strides = [1, 1]} : vector<8x128xf32> to vector<8x96xf32>
    %158 = arith.negf %157 : vector<8x96xf32>
    %159 = math.exp %158 : vector<8x96xf32>
    %cst_52 = arith.constant 1.000000e+00 : f32
    %160 = vector.broadcast %cst_52 : f32 to vector<8x96xf32>
    %161 = arith.addf %160, %159 : vector<8x96xf32>
    %162 = arith.divf %160, %161 : vector<8x96xf32>
    %163 = vector.extract_strided_slice %156 {offsets = [0, 96], sizes = [8, 32], strides = [1, 1]} : vector<8x128xf32> to vector<8x32xf32>
    %164 = math.tanh %163 : vector<8x32xf32>
    %165 = vector.extract_strided_slice %162 {offsets = [0, 0], sizes = [8, 32], strides = [1, 1]} : vector<8x96xf32> to vector<8x32xf32>
    %166 = vector.extract_strided_slice %162 {offsets = [0, 32], sizes = [8, 32], strides = [1, 1]} : vector<8x96xf32> to vector<8x32xf32>
    %167 = vector.extract_strided_slice %162 {offsets = [0, 64], sizes = [8, 32], strides = [1, 1]} : vector<8x96xf32> to vector<8x32xf32>
    %168 = arith.mulf %166, %127 : vector<8x32xf32>
    %169 = arith.mulf %165, %164 : vector<8x32xf32>
    %170 = arith.addf %168, %169 : vector<8x32xf32>
    %171 = math.tanh %170 : vector<8x32xf32>
    %172 = arith.mulf %167, %171 : vector<8x32xf32>
    %c16_53 = arith.constant 16 : index
    %c0_54 = arith.constant 0 : index
    %173 = vector.load %arg16[%c16_53, %c0_54] : memref<64x32xf32, #tpu.memory_space<vmem>>, vector<8x32xf32>
    tpu.vector_store %arg16[%c16_53, %c0_54], %172 {strides = array<i32>} : memref<64x32xf32, #tpu.memory_space<vmem>>, vector<8x32xf32>,
    %c32 = arith.constant 32 : index
    %c0_55 = arith.constant 0 : index
    %174 = vector.load %arg15[%c32, %c0_55] : memref<64x128xf32, #tpu.memory_space<vmem>>, vector<8x128xf32>
    %175 = arith.truncf %150 : vector<8x32xf32> to vector<8x32xbf16>
    %cst_56 = arith.constant dense<0.000000e+00> : vector<8x128xf32>
    %176 = tpu.matmul %175, %11, %cst_56 {dimension_numbers = #tpu.dot_dimension_numbers<[1], [0], [0], [1], [0, 0, 1, 1], [], []>} : vector<8x32xbf16>, vector<32x128xbf16>, vector<8x128xf32> -> vector<8x128xf32>
    %177 = arith.addf %174, %176 : vector<8x128xf32>
    %178 = vector.extract_strided_slice %177 {offsets = [0, 0], sizes = [8, 96], strides = [1, 1]} : vector<8x128xf32> to vector<8x96xf32>
    %179 = arith.negf %178 : vector<8x96xf32>
    %180 = math.exp %179 : vector<8x96xf32>
    %cst_57 = arith.constant 1.000000e+00 : f32
    %181 = vector.broadcast %cst_57 : f32 to vector<8x96xf32>
    %182 = arith.addf %181, %180 : vector<8x96xf32>
    %183 = arith.divf %181, %182 : vector<8x96xf32>
    %184 = vector.extract_strided_slice %177 {offsets = [0, 96], sizes = [8, 32], strides = [1, 1]} : vector<8x128xf32> to vector<8x32xf32>
    %185 = math.tanh %184 : vector<8x32xf32>
    %186 = vector.extract_strided_slice %183 {offsets = [0, 0], sizes = [8, 32], strides = [1, 1]} : vector<8x96xf32> to vector<8x32xf32>
    %187 = vector.extract_strided_slice %183 {offsets = [0, 32], sizes = [8, 32], strides = [1, 1]} : vector<8x96xf32> to vector<8x32xf32>
    %188 = vector.extract_strided_slice %183 {offsets = [0, 64], sizes = [8, 32], strides = [1, 1]} : vector<8x96xf32> to vector<8x32xf32>
    %189 = arith.mulf %187, %148 : vector<8x32xf32>
    %190 = arith.mulf %186, %185 : vector<8x32xf32>
    %191 = arith.addf %189, %190 : vector<8x32xf32>
    %192 = math.tanh %191 : vector<8x32xf32>
    %193 = arith.mulf %188, %192 : vector<8x32xf32>
    %194 = arith.truncf %150 : vector<8x32xf32> to vector<8x32xbf16>
    %cst_58 = arith.constant dense<0.000000e+00> : vector<8x128xf32>
    %195 = tpu.matmul %194, %13, %cst_58 {dimension_numbers = #tpu.dot_dimension_numbers<[1], [0], [0], [1], [0, 0, 1, 1], [], []>} : vector<8x32xbf16>, vector<32x128xbf16>, vector<8x128xf32> -> vector<8x128xf32>
    %196 = arith.truncf %172 : vector<8x32xf32> to vector<8x32xbf16>
    %cst_59 = arith.constant dense<0.000000e+00> : vector<8x128xf32>
    %197 = tpu.matmul %196, %12, %cst_59 {dimension_numbers = #tpu.dot_dimension_numbers<[1], [0], [0], [1], [0, 0, 1, 1], [], []>} : vector<8x32xbf16>, vector<32x128xbf16>, vector<8x128xf32> -> vector<8x128xf32>
    %198 = arith.addf %195, %197 : vector<8x128xf32>
    %199 = arith.addf %198, %16 : vector<8x128xf32>
    %200 = vector.extract_strided_slice %199 {offsets = [0, 0], sizes = [8, 96], strides = [1, 1]} : vector<8x128xf32> to vector<8x96xf32>
    %201 = arith.negf %200 : vector<8x96xf32>
    %202 = math.exp %201 : vector<8x96xf32>
    %cst_60 = arith.constant 1.000000e+00 : f32
    %203 = vector.broadcast %cst_60 : f32 to vector<8x96xf32>
    %204 = arith.addf %203, %202 : vector<8x96xf32>
    %205 = arith.divf %203, %204 : vector<8x96xf32>
    %206 = vector.extract_strided_slice %199 {offsets = [0, 96], sizes = [8, 32], strides = [1, 1]} : vector<8x128xf32> to vector<8x32xf32>
    %207 = math.tanh %206 : vector<8x32xf32>
    %208 = vector.extract_strided_slice %205 {offsets = [0, 0], sizes = [8, 32], strides = [1, 1]} : vector<8x96xf32> to vector<8x32xf32>
    %209 = vector.extract_strided_slice %205 {offsets = [0, 32], sizes = [8, 32], strides = [1, 1]} : vector<8x96xf32> to vector<8x32xf32>
    %210 = vector.extract_strided_slice %205 {offsets = [0, 64], sizes = [8, 32], strides = [1, 1]} : vector<8x96xf32> to vector<8x32xf32>
    %211 = arith.mulf %209, %170 : vector<8x32xf32>
    %212 = arith.mulf %208, %207 : vector<8x32xf32>
    %213 = arith.addf %211, %212 : vector<8x32xf32>
    %214 = math.tanh %213 : vector<8x32xf32>
    %215 = arith.mulf %210, %214 : vector<8x32xf32>
    %c24_61 = arith.constant 24 : index
    %c0_62 = arith.constant 0 : index
    %216 = vector.load %arg16[%c24_61, %c0_62] : memref<64x32xf32, #tpu.memory_space<vmem>>, vector<8x32xf32>
    tpu.vector_store %arg16[%c24_61, %c0_62], %215 {strides = array<i32>} : memref<64x32xf32, #tpu.memory_space<vmem>>, vector<8x32xf32>,
    %c40 = arith.constant 40 : index
    %c0_63 = arith.constant 0 : index
    %217 = vector.load %arg15[%c40, %c0_63] : memref<64x128xf32, #tpu.memory_space<vmem>>, vector<8x128xf32>
    %218 = arith.truncf %193 : vector<8x32xf32> to vector<8x32xbf16>
    %cst_64 = arith.constant dense<0.000000e+00> : vector<8x128xf32>
    %219 = tpu.matmul %218, %11, %cst_64 {dimension_numbers = #tpu.dot_dimension_numbers<[1], [0], [0], [1], [0, 0, 1, 1], [], []>} : vector<8x32xbf16>, vector<32x128xbf16>, vector<8x128xf32> -> vector<8x128xf32>
    %220 = arith.addf %217, %219 : vector<8x128xf32>
    %221 = vector.extract_strided_slice %220 {offsets = [0, 0], sizes = [8, 96], strides = [1, 1]} : vector<8x128xf32> to vector<8x96xf32>
    %222 = arith.negf %221 : vector<8x96xf32>
    %223 = math.exp %222 : vector<8x96xf32>
    %cst_65 = arith.constant 1.000000e+00 : f32
    %224 = vector.broadcast %cst_65 : f32 to vector<8x96xf32>
    %225 = arith.addf %224, %223 : vector<8x96xf32>
    %226 = arith.divf %224, %225 : vector<8x96xf32>
    %227 = vector.extract_strided_slice %220 {offsets = [0, 96], sizes = [8, 32], strides = [1, 1]} : vector<8x128xf32> to vector<8x32xf32>
    %228 = math.tanh %227 : vector<8x32xf32>
    %229 = vector.extract_strided_slice %226 {offsets = [0, 0], sizes = [8, 32], strides = [1, 1]} : vector<8x96xf32> to vector<8x32xf32>
    %230 = vector.extract_strided_slice %226 {offsets = [0, 32], sizes = [8, 32], strides = [1, 1]} : vector<8x96xf32> to vector<8x32xf32>
    %231 = vector.extract_strided_slice %226 {offsets = [0, 64], sizes = [8, 32], strides = [1, 1]} : vector<8x96xf32> to vector<8x32xf32>
    %232 = arith.mulf %230, %191 : vector<8x32xf32>
    %233 = arith.mulf %229, %228 : vector<8x32xf32>
    %234 = arith.addf %232, %233 : vector<8x32xf32>
    %235 = math.tanh %234 : vector<8x32xf32>
    %236 = arith.mulf %231, %235 : vector<8x32xf32>
    %237 = arith.truncf %193 : vector<8x32xf32> to vector<8x32xbf16>
    %cst_66 = arith.constant dense<0.000000e+00> : vector<8x128xf32>
    %238 = tpu.matmul %237, %13, %cst_66 {dimension_numbers = #tpu.dot_dimension_numbers<[1], [0], [0], [1], [0, 0, 1, 1], [], []>} : vector<8x32xbf16>, vector<32x128xbf16>, vector<8x128xf32> -> vector<8x128xf32>
    %239 = arith.truncf %215 : vector<8x32xf32> to vector<8x32xbf16>
    %cst_67 = arith.constant dense<0.000000e+00> : vector<8x128xf32>
    %240 = tpu.matmul %239, %12, %cst_67 {dimension_numbers = #tpu.dot_dimension_numbers<[1], [0], [0], [1], [0, 0, 1, 1], [], []>} : vector<8x32xbf16>, vector<32x128xbf16>, vector<8x128xf32> -> vector<8x128xf32>
    %241 = arith.addf %238, %240 : vector<8x128xf32>
    %242 = arith.addf %241, %16 : vector<8x128xf32>
    %243 = vector.extract_strided_slice %242 {offsets = [0, 0], sizes = [8, 96], strides = [1, 1]} : vector<8x128xf32> to vector<8x96xf32>
    %244 = arith.negf %243 : vector<8x96xf32>
    %245 = math.exp %244 : vector<8x96xf32>
    %cst_68 = arith.constant 1.000000e+00 : f32
    %246 = vector.broadcast %cst_68 : f32 to vector<8x96xf32>
    %247 = arith.addf %246, %245 : vector<8x96xf32>
    %248 = arith.divf %246, %247 : vector<8x96xf32>
    %249 = vector.extract_strided_slice %242 {offsets = [0, 96], sizes = [8, 32], strides = [1, 1]} : vector<8x128xf32> to vector<8x32xf32>
    %250 = math.tanh %249 : vector<8x32xf32>
    %251 = vector.extract_strided_slice %248 {offsets = [0, 0], sizes = [8, 32], strides = [1, 1]} : vector<8x96xf32> to vector<8x32xf32>
    %252 = vector.extract_strided_slice %248 {offsets = [0, 32], sizes = [8, 32], strides = [1, 1]} : vector<8x96xf32> to vector<8x32xf32>
    %253 = vector.extract_strided_slice %248 {offsets = [0, 64], sizes = [8, 32], strides = [1, 1]} : vector<8x96xf32> to vector<8x32xf32>
    %254 = arith.mulf %252, %213 : vector<8x32xf32>
    %255 = arith.mulf %251, %250 : vector<8x32xf32>
    %256 = arith.addf %254, %255 : vector<8x32xf32>
    %257 = math.tanh %256 : vector<8x32xf32>
    %258 = arith.mulf %253, %257 : vector<8x32xf32>
    %c32_69 = arith.constant 32 : index
    %c0_70 = arith.constant 0 : index
    %259 = vector.load %arg16[%c32_69, %c0_70] : memref<64x32xf32, #tpu.memory_space<vmem>>, vector<8x32xf32>
    tpu.vector_store %arg16[%c32_69, %c0_70], %258 {strides = array<i32>} : memref<64x32xf32, #tpu.memory_space<vmem>>, vector<8x32xf32>,
    %c48 = arith.constant 48 : index
    %c0_71 = arith.constant 0 : index
    %260 = vector.load %arg15[%c48, %c0_71] : memref<64x128xf32, #tpu.memory_space<vmem>>, vector<8x128xf32>
    %261 = arith.truncf %236 : vector<8x32xf32> to vector<8x32xbf16>
    %cst_72 = arith.constant dense<0.000000e+00> : vector<8x128xf32>
    %262 = tpu.matmul %261, %11, %cst_72 {dimension_numbers = #tpu.dot_dimension_numbers<[1], [0], [0], [1], [0, 0, 1, 1], [], []>} : vector<8x32xbf16>, vector<32x128xbf16>, vector<8x128xf32> -> vector<8x128xf32>
    %263 = arith.addf %260, %262 : vector<8x128xf32>
    %264 = vector.extract_strided_slice %263 {offsets = [0, 0], sizes = [8, 96], strides = [1, 1]} : vector<8x128xf32> to vector<8x96xf32>
    %265 = arith.negf %264 : vector<8x96xf32>
    %266 = math.exp %265 : vector<8x96xf32>
    %cst_73 = arith.constant 1.000000e+00 : f32
    %267 = vector.broadcast %cst_73 : f32 to vector<8x96xf32>
    %268 = arith.addf %267, %266 : vector<8x96xf32>
    %269 = arith.divf %267, %268 : vector<8x96xf32>
    %270 = vector.extract_strided_slice %263 {offsets = [0, 96], sizes = [8, 32], strides = [1, 1]} : vector<8x128xf32> to vector<8x32xf32>
    %271 = math.tanh %270 : vector<8x32xf32>
    %272 = vector.extract_strided_slice %269 {offsets = [0, 0], sizes = [8, 32], strides = [1, 1]} : vector<8x96xf32> to vector<8x32xf32>
    %273 = vector.extract_strided_slice %269 {offsets = [0, 32], sizes = [8, 32], strides = [1, 1]} : vector<8x96xf32> to vector<8x32xf32>
    %274 = vector.extract_strided_slice %269 {offsets = [0, 64], sizes = [8, 32], strides = [1, 1]} : vector<8x96xf32> to vector<8x32xf32>
    %275 = arith.mulf %273, %234 : vector<8x32xf32>
    %276 = arith.mulf %272, %271 : vector<8x32xf32>
    %277 = arith.addf %275, %276 : vector<8x32xf32>
    %278 = math.tanh %277 : vector<8x32xf32>
    %279 = arith.mulf %274, %278 : vector<8x32xf32>
    %280 = arith.truncf %236 : vector<8x32xf32> to vector<8x32xbf16>
    %cst_74 = arith.constant dense<0.000000e+00> : vector<8x128xf32>
    %281 = tpu.matmul %280, %13, %cst_74 {dimension_numbers = #tpu.dot_dimension_numbers<[1], [0], [0], [1], [0, 0, 1, 1], [], []>} : vector<8x32xbf16>, vector<32x128xbf16>, vector<8x128xf32> -> vector<8x128xf32>
    %282 = arith.truncf %258 : vector<8x32xf32> to vector<8x32xbf16>
    %cst_75 = arith.constant dense<0.000000e+00> : vector<8x128xf32>
    %283 = tpu.matmul %282, %12, %cst_75 {dimension_numbers = #tpu.dot_dimension_numbers<[1], [0], [0], [1], [0, 0, 1, 1], [], []>} : vector<8x32xbf16>, vector<32x128xbf16>, vector<8x128xf32> -> vector<8x128xf32>
    %284 = arith.addf %281, %283 : vector<8x128xf32>
    %285 = arith.addf %284, %16 : vector<8x128xf32>
    %286 = vector.extract_strided_slice %285 {offsets = [0, 0], sizes = [8, 96], strides = [1, 1]} : vector<8x128xf32> to vector<8x96xf32>
    %287 = arith.negf %286 : vector<8x96xf32>
    %288 = math.exp %287 : vector<8x96xf32>
    %cst_76 = arith.constant 1.000000e+00 : f32
    %289 = vector.broadcast %cst_76 : f32 to vector<8x96xf32>
    %290 = arith.addf %289, %288 : vector<8x96xf32>
    %291 = arith.divf %289, %290 : vector<8x96xf32>
    %292 = vector.extract_strided_slice %285 {offsets = [0, 96], sizes = [8, 32], strides = [1, 1]} : vector<8x128xf32> to vector<8x32xf32>
    %293 = math.tanh %292 : vector<8x32xf32>
    %294 = vector.extract_strided_slice %291 {offsets = [0, 0], sizes = [8, 32], strides = [1, 1]} : vector<8x96xf32> to vector<8x32xf32>
    %295 = vector.extract_strided_slice %291 {offsets = [0, 32], sizes = [8, 32], strides = [1, 1]} : vector<8x96xf32> to vector<8x32xf32>
    %296 = vector.extract_strided_slice %291 {offsets = [0, 64], sizes = [8, 32], strides = [1, 1]} : vector<8x96xf32> to vector<8x32xf32>
    %297 = arith.mulf %295, %256 : vector<8x32xf32>
    %298 = arith.mulf %294, %293 : vector<8x32xf32>
    %299 = arith.addf %297, %298 : vector<8x32xf32>
    %300 = math.tanh %299 : vector<8x32xf32>
    %301 = arith.mulf %296, %300 : vector<8x32xf32>
    %c40_77 = arith.constant 40 : index
    %c0_78 = arith.constant 0 : index
    %302 = vector.load %arg16[%c40_77, %c0_78] : memref<64x32xf32, #tpu.memory_space<vmem>>, vector<8x32xf32>
    tpu.vector_store %arg16[%c40_77, %c0_78], %301 {strides = array<i32>} : memref<64x32xf32, #tpu.memory_space<vmem>>, vector<8x32xf32>,
    %c56 = arith.constant 56 : index
    %c0_79 = arith.constant 0 : index
    %303 = vector.load %arg15[%c56, %c0_79] : memref<64x128xf32, #tpu.memory_space<vmem>>, vector<8x128xf32>
    %304 = arith.truncf %279 : vector<8x32xf32> to vector<8x32xbf16>
    %cst_80 = arith.constant dense<0.000000e+00> : vector<8x128xf32>
    %305 = tpu.matmul %304, %11, %cst_80 {dimension_numbers = #tpu.dot_dimension_numbers<[1], [0], [0], [1], [0, 0, 1, 1], [], []>} : vector<8x32xbf16>, vector<32x128xbf16>, vector<8x128xf32> -> vector<8x128xf32>
    %306 = arith.addf %303, %305 : vector<8x128xf32>
    %307 = vector.extract_strided_slice %306 {offsets = [0, 0], sizes = [8, 96], strides = [1, 1]} : vector<8x128xf32> to vector<8x96xf32>
    %308 = arith.negf %307 : vector<8x96xf32>
    %309 = math.exp %308 : vector<8x96xf32>
    %cst_81 = arith.constant 1.000000e+00 : f32
    %310 = vector.broadcast %cst_81 : f32 to vector<8x96xf32>
    %311 = arith.addf %310, %309 : vector<8x96xf32>
    %312 = arith.divf %310, %311 : vector<8x96xf32>
    %313 = vector.extract_strided_slice %306 {offsets = [0, 96], sizes = [8, 32], strides = [1, 1]} : vector<8x128xf32> to vector<8x32xf32>
    %314 = math.tanh %313 : vector<8x32xf32>
    %315 = vector.extract_strided_slice %312 {offsets = [0, 0], sizes = [8, 32], strides = [1, 1]} : vector<8x96xf32> to vector<8x32xf32>
    %316 = vector.extract_strided_slice %312 {offsets = [0, 32], sizes = [8, 32], strides = [1, 1]} : vector<8x96xf32> to vector<8x32xf32>
    %317 = vector.extract_strided_slice %312 {offsets = [0, 64], sizes = [8, 32], strides = [1, 1]} : vector<8x96xf32> to vector<8x32xf32>
    %318 = arith.mulf %316, %277 : vector<8x32xf32>
    %319 = arith.mulf %315, %314 : vector<8x32xf32>
    %320 = arith.addf %318, %319 : vector<8x32xf32>
    %321 = math.tanh %320 : vector<8x32xf32>
    %322 = arith.mulf %317, %321 : vector<8x32xf32>
    %323 = arith.truncf %279 : vector<8x32xf32> to vector<8x32xbf16>
    %cst_82 = arith.constant dense<0.000000e+00> : vector<8x128xf32>
    %324 = tpu.matmul %323, %13, %cst_82 {dimension_numbers = #tpu.dot_dimension_numbers<[1], [0], [0], [1], [0, 0, 1, 1], [], []>} : vector<8x32xbf16>, vector<32x128xbf16>, vector<8x128xf32> -> vector<8x128xf32>
    %325 = arith.truncf %301 : vector<8x32xf32> to vector<8x32xbf16>
    %cst_83 = arith.constant dense<0.000000e+00> : vector<8x128xf32>
    %326 = tpu.matmul %325, %12, %cst_83 {dimension_numbers = #tpu.dot_dimension_numbers<[1], [0], [0], [1], [0, 0, 1, 1], [], []>} : vector<8x32xbf16>, vector<32x128xbf16>, vector<8x128xf32> -> vector<8x128xf32>
    %327 = arith.addf %324, %326 : vector<8x128xf32>
    %328 = arith.addf %327, %16 : vector<8x128xf32>
    %329 = vector.extract_strided_slice %328 {offsets = [0, 0], sizes = [8, 96], strides = [1, 1]} : vector<8x128xf32> to vector<8x96xf32>
    %330 = arith.negf %329 : vector<8x96xf32>
    %331 = math.exp %330 : vector<8x96xf32>
    %cst_84 = arith.constant 1.000000e+00 : f32
    %332 = vector.broadcast %cst_84 : f32 to vector<8x96xf32>
    %333 = arith.addf %332, %331 : vector<8x96xf32>
    %334 = arith.divf %332, %333 : vector<8x96xf32>
    %335 = vector.extract_strided_slice %328 {offsets = [0, 96], sizes = [8, 32], strides = [1, 1]} : vector<8x128xf32> to vector<8x32xf32>
    %336 = math.tanh %335 : vector<8x32xf32>
    %337 = vector.extract_strided_slice %334 {offsets = [0, 0], sizes = [8, 32], strides = [1, 1]} : vector<8x96xf32> to vector<8x32xf32>
    %338 = vector.extract_strided_slice %334 {offsets = [0, 32], sizes = [8, 32], strides = [1, 1]} : vector<8x96xf32> to vector<8x32xf32>
    %339 = vector.extract_strided_slice %334 {offsets = [0, 64], sizes = [8, 32], strides = [1, 1]} : vector<8x96xf32> to vector<8x32xf32>
    %340 = arith.mulf %338, %299 : vector<8x32xf32>
    %341 = arith.mulf %337, %336 : vector<8x32xf32>
    %342 = arith.addf %340, %341 : vector<8x32xf32>
    %343 = math.tanh %342 : vector<8x32xf32>
    %344 = arith.mulf %339, %343 : vector<8x32xf32>
    %c48_85 = arith.constant 48 : index
    %c0_86 = arith.constant 0 : index
    %345 = vector.load %arg16[%c48_85, %c0_86] : memref<64x32xf32, #tpu.memory_space<vmem>>, vector<8x32xf32>
    tpu.vector_store %arg16[%c48_85, %c0_86], %344 {strides = array<i32>} : memref<64x32xf32, #tpu.memory_space<vmem>>, vector<8x32xf32>,
    %346 = arith.truncf %322 : vector<8x32xf32> to vector<8x32xbf16>
    %cst_87 = arith.constant dense<0.000000e+00> : vector<8x128xf32>
    %347 = tpu.matmul %346, %13, %cst_87 {dimension_numbers = #tpu.dot_dimension_numbers<[1], [0], [0], [1], [0, 0, 1, 1], [], []>} : vector<8x32xbf16>, vector<32x128xbf16>, vector<8x128xf32> -> vector<8x128xf32>
    %348 = arith.truncf %344 : vector<8x32xf32> to vector<8x32xbf16>
    %cst_88 = arith.constant dense<0.000000e+00> : vector<8x128xf32>
    %349 = tpu.matmul %348, %12, %cst_88 {dimension_numbers = #tpu.dot_dimension_numbers<[1], [0], [0], [1], [0, 0, 1, 1], [], []>} : vector<8x32xbf16>, vector<32x128xbf16>, vector<8x128xf32> -> vector<8x128xf32>
    %350 = arith.addf %347, %349 : vector<8x128xf32>
    %351 = arith.addf %350, %16 : vector<8x128xf32>
    %352 = vector.extract_strided_slice %351 {offsets = [0, 0], sizes = [8, 96], strides = [1, 1]} : vector<8x128xf32> to vector<8x96xf32>
    %353 = arith.negf %352 : vector<8x96xf32>
    %354 = math.exp %353 : vector<8x96xf32>
    %cst_89 = arith.constant 1.000000e+00 : f32
    %355 = vector.broadcast %cst_89 : f32 to vector<8x96xf32>
    %356 = arith.addf %355, %354 : vector<8x96xf32>
    %357 = arith.divf %355, %356 : vector<8x96xf32>
    %358 = vector.extract_strided_slice %351 {offsets = [0, 96], sizes = [8, 32], strides = [1, 1]} : vector<8x128xf32> to vector<8x32xf32>
    %359 = math.tanh %358 : vector<8x32xf32>
    %360 = vector.extract_strided_slice %357 {offsets = [0, 0], sizes = [8, 32], strides = [1, 1]} : vector<8x96xf32> to vector<8x32xf32>
    %361 = vector.extract_strided_slice %357 {offsets = [0, 32], sizes = [8, 32], strides = [1, 1]} : vector<8x96xf32> to vector<8x32xf32>
    %362 = vector.extract_strided_slice %357 {offsets = [0, 64], sizes = [8, 32], strides = [1, 1]} : vector<8x96xf32> to vector<8x32xf32>
    %363 = arith.mulf %361, %342 : vector<8x32xf32>
    %364 = arith.mulf %360, %359 : vector<8x32xf32>
    %365 = arith.addf %363, %364 : vector<8x32xf32>
    %366 = math.tanh %365 : vector<8x32xf32>
    %367 = arith.mulf %362, %366 : vector<8x32xf32>
    %c56_90 = arith.constant 56 : index
    %c0_91 = arith.constant 0 : index
    %368 = vector.load %arg16[%c56_90, %c0_91] : memref<64x32xf32, #tpu.memory_space<vmem>>, vector<8x32xf32>
    tpu.vector_store %arg16[%c56_90, %c0_91], %367 {strides = array<i32>} : memref<64x32xf32, #tpu.memory_space<vmem>>, vector<8x32xf32>,
    %c0_92 = arith.constant 0 : index
    %c0_93 = arith.constant 0 : index
    %c0_94 = arith.constant 0 : index
    %369 = vector.load %arg13[%c0_92, %c0_93, %c0_94] : memref<2x8x32xf32, #tpu.memory_space<vmem>>, vector<1x8x32xf32>
    %370 = vector.shape_cast %369 : vector<1x8x32xf32> to vector<8x32xf32>
    %371 = vector.shape_cast %322 : vector<8x32xf32> to vector<1x8x32xf32>
    tpu.vector_store %arg13[%c0_92, %c0_93, %c0_94], %371 {strides = array<i32>} : memref<2x8x32xf32, #tpu.memory_space<vmem>>, vector<1x8x32xf32>,
    %c0_95 = arith.constant 0 : index
    %c0_96 = arith.constant 0 : index
    %c0_97 = arith.constant 0 : index
    %372 = vector.load %arg14[%c0_95, %c0_96, %c0_97] : memref<2x8x32xf32, #tpu.memory_space<vmem>>, vector<1x8x32xf32>
    %373 = vector.shape_cast %372 : vector<1x8x32xf32> to vector<8x32xf32>
    %374 = vector.shape_cast %320 : vector<8x32xf32> to vector<1x8x32xf32>
    tpu.vector_store %arg14[%c0_95, %c0_96, %c0_97], %374 {strides = array<i32>} : memref<2x8x32xf32, #tpu.memory_space<vmem>>, vector<1x8x32xf32>,
    %c1_98 = arith.constant 1 : index
    %c0_99 = arith.constant 0 : index
    %c0_100 = arith.constant 0 : index
    %375 = vector.load %arg13[%c1_98, %c0_99, %c0_100] : memref<2x8x32xf32, #tpu.memory_space<vmem>>, vector<1x8x32xf32>
    %376 = vector.shape_cast %375 : vector<1x8x32xf32> to vector<8x32xf32>
    %377 = vector.shape_cast %367 : vector<8x32xf32> to vector<1x8x32xf32>
    tpu.vector_store %arg13[%c1_98, %c0_99, %c0_100], %377 {strides = array<i32>} : memref<2x8x32xf32, #tpu.memory_space<vmem>>, vector<1x8x32xf32>,
    %c1_101 = arith.constant 1 : index
    %c0_102 = arith.constant 0 : index
    %c0_103 = arith.constant 0 : index
    %378 = vector.load %arg14[%c1_101, %c0_102, %c0_103] : memref<2x8x32xf32, #tpu.memory_space<vmem>>, vector<1x8x32xf32>
    %379 = vector.shape_cast %378 : vector<1x8x32xf32> to vector<8x32xf32>
    %380 = vector.shape_cast %365 : vector<8x32xf32> to vector<1x8x32xf32>
    tpu.vector_store %arg14[%c1_101, %c0_102, %c0_103], %380 {strides = array<i32>} : memref<2x8x32xf32, #tpu.memory_space<vmem>>, vector<1x8x32xf32>,
    %c0_104 = arith.constant 0 : index
    %c0_105 = arith.constant 0 : index
    %381 = vector.load %arg16[%c0_104, %c0_105] : memref<64x32xf32, #tpu.memory_space<vmem>>, vector<64x32xf32>
    %382 = arith.truncf %381 : vector<64x32xf32> to vector<64x32xbf16>
    %c0_106 = arith.constant 0 : index
    %c0_107 = arith.constant 0 : index
    %383 = vector.load %arg8[%c0_106, %c0_107] : memref<32x128xbf16, #tpu.memory_space<vmem>>, vector<32x128xbf16>
    %cst_108 = arith.constant dense<0.000000e+00> : vector<64x128xf32>
    %384 = tpu.matmul %382, %383, %cst_108 {dimension_numbers = #tpu.dot_dimension_numbers<[1], [0], [0], [1], [0, 0, 1, 1], [], []>} : vector<64x32xbf16>, vector<32x128xbf16>, vector<64x128xf32> -> vector<64x128xf32>
    %c0_109 = arith.constant 0 : index
    %c0_110 = arith.constant 0 : index
    %385 = vector.load %arg9[%c0_109, %c0_110] : memref<1x128xf32, #tpu.memory_space<vmem>>, vector<1x128xf32>
    %386 = vector.broadcast %385 : vector<1x128xf32> to vector<64x128xf32>
    %387 = arith.addf %384, %386 : vector<64x128xf32>
    %c0_111 = arith.constant 0 : index
    %c0_112 = arith.constant 0 : index
    %388 = vector.load %arg12[%c0_111, %c0_112] : memref<64x128xf32, #tpu.memory_space<vmem>>, vector<64x128xf32>
    tpu.vector_store %arg12[%c0_111, %c0_112], %387 {strides = array<i32>} : memref<64x128xf32, #tpu.memory_space<vmem>>, vector<64x128xf32>,
    return
  }
  func.func @transform_0(%arg0: i32) -> (i32, i32) {
    %c0_i32 = arith.constant 0 : i32
    %c0_i32_0 = arith.constant 0 : i32
    return %arg0, %c0_i32 : i32, i32
  }
  func.func @transform_1(%arg0: i32) -> (i32, i32) {
    %c0_i32 = arith.constant 0 : i32
    %c0_i32_0 = arith.constant 0 : i32
    %c0_i32_1 = arith.constant 0 : i32
    return %c0_i32, %c0_i32_0 : i32, i32
  }
  func.func @transform_2(%arg0: i32) -> (i32, i32) {
    %c0_i32 = arith.constant 0 : i32
    %c0_i32_0 = arith.constant 0 : i32
    %c0_i32_1 = arith.constant 0 : i32
    return %c0_i32, %c0_i32_0 : i32, i32
  }
  func.func @transform_3(%arg0: i32) -> (i32, i32) {
    %c0_i32 = arith.constant 0 : i32
    %c0_i32_0 = arith.constant 0 : i32
    %c0_i32_1 = arith.constant 0 : i32
    return %c0_i32, %c0_i32_0 : i32, i32
  }
  func.func @transform_4(%arg0: i32) -> (i32, i32) {
    %c0_i32 = arith.constant 0 : i32
    %c0_i32_0 = arith.constant 0 : i32
    %c0_i32_1 = arith.constant 0 : i32
    return %c0_i32, %c0_i32_0 : i32, i32
  }
  func.func @transform_5(%arg0: i32) -> (i32, i32) {
    %c0_i32 = arith.constant 0 : i32
    %c0_i32_0 = arith.constant 0 : i32
    %c0_i32_1 = arith.constant 0 : i32
    return %c0_i32, %c0_i32_0 : i32, i32
  }
  func.func @transform_6(%arg0: i32) -> (i32, i32) {
    %c0_i32 = arith.constant 0 : i32
    %c0_i32_0 = arith.constant 0 : i32
    %c0_i32_1 = arith.constant 0 : i32
    return %c0_i32, %c0_i32_0 : i32, i32
  }
  func.func @transform_7(%arg0: i32) -> (i32, i32) {
    %c0_i32 = arith.constant 0 : i32
    %c0_i32_0 = arith.constant 0 : i32
    %c0_i32_1 = arith.constant 0 : i32
    return %c0_i32, %c0_i32_0 : i32, i32
  }
  func.func @transform_8(%arg0: i32) -> (i32, i32) {
    %c0_i32 = arith.constant 0 : i32
    %c0_i32_0 = arith.constant 0 : i32
    %c0_i32_1 = arith.constant 0 : i32
    return %c0_i32, %c0_i32_0 : i32, i32
  }
  func.func @transform_9(%arg0: i32) -> (i32, i32, i32) {
    %c0_i32 = arith.constant 0 : i32
    %c0_i32_0 = arith.constant 0 : i32
    %c0_i32_1 = arith.constant 0 : i32
    %c0_i32_2 = arith.constant 0 : i32
    return %c0_i32, %c0_i32_0, %c0_i32_1 : i32, i32, i32
  }
  func.func @transform_10(%arg0: i32) -> (i32, i32, i32) {
    %c0_i32 = arith.constant 0 : i32
    %c0_i32_0 = arith.constant 0 : i32
    %c0_i32_1 = arith.constant 0 : i32
    %c0_i32_2 = arith.constant 0 : i32
    return %c0_i32, %c0_i32_0, %c0_i32_1 : i32, i32, i32
  }
  func.func @transform_11(%arg0: i32) -> (i32, i32) {
    %c0_i32 = arith.constant 0 : i32
    %c0_i32_0 = arith.constant 0 : i32
    return %arg0, %c0_i32 : i32, i32
  }
  func.func @transform_12(%arg0: i32) -> (i32, i32, i32) {
    %c0_i32 = arith.constant 0 : i32
    %c0_i32_0 = arith.constant 0 : i32
    %c0_i32_1 = arith.constant 0 : i32
    %c0_i32_2 = arith.constant 0 : i32
    return %c0_i32, %c0_i32_0, %c0_i32_1 : i32, i32, i32
  }
  func.func @transform_13(%arg0: i32) -> (i32, i32, i32) {
    %c0_i32 = arith.constant 0 : i32
    %c0_i32_0 = arith.constant 0 : i32
    %c0_i32_1 = arith.constant 0 : i32
    %c0_i32_2 = arith.constant 0 : i32
    return %c0_i32, %c0_i32_0, %c0_i32_1 : i32, i32, i32
  }
}

</mosaic_0001>

<llo_original>
// kernel: tpu_custom_call.1
$region0: #{tpu_custom_call.1}
  #allocation0 [shape = 'u32[]', space=smem, size = 0x4, offset = 0x4, fixed_abs, tag = 'smem constant byte address 0x4 - core index']
  #allocation1 [shape = 'u32[144,128]{1,0:T(1,128)}', space=vmem, size = 0x12000, scoped, tag = 'internal scratch']
  #allocation2 [shape = 'f32[64,128]{1,0:T(8,128)}', space=vmem, size = 0x8000, scoped, tag = 'scratch operand']
  #allocation3 [shape = 'f32[64,32]{1,0:T(8,128)}', space=vmem, size = 0x8000, scoped, tag = 'scratch operand']
  %s0 = inlined_call_operand.vmem [shape: f32[64,32], index: 0, kind: input, shape index: {}]
  %s1 = inlined_call_operand.vmem [shape: bf16[32,128], index: 1, kind: input, shape index: {}]
  %s2 = inlined_call_operand.vmem [shape: bf16[32,128], index: 2, kind: input, shape index: {}]
  %s3 = inlined_call_operand.vmem [shape: f32[1,128], index: 3, kind: input, shape index: {}]
  %s4 = inlined_call_operand.vmem [shape: bf16[32,128], index: 4, kind: input, shape index: {}]
  %s5 = inlined_call_operand.vmem [shape: bf16[32,128], index: 5, kind: input, shape index: {}]
  %s6 = inlined_call_operand.vmem [shape: f32[1,128], index: 6, kind: input, shape index: {}]
  %s7 = inlined_call_operand.vmem [shape: bf16[32,128], index: 7, kind: input, shape index: {}]
  %s8 = inlined_call_operand.vmem [shape: f32[1,128], index: 8, kind: input, shape index: {}]
  %s9 = inlined_call_operand.hbm [shape: f32[2,8,32], index: 9, kind: input, shape index: {}, may-alias: {9,12}]
  %s10 = inlined_call_operand.hbm [shape: f32[2,8,32], index: 10, kind: input, shape index: {}, may-alias: {10,13}]
  %s11 = inlined_call_operand.hbm [shape: f32[64,128], index: 11, kind: output, shape index: {0}]
  %s12 = inlined_call_operand.hbm [shape: f32[2,8,32], index: 12, kind: output, shape index: {1}, may-alias: {9,12}]
  %s13 = inlined_call_operand.hbm [shape: f32[2,8,32], index: 13, kind: output, shape index: {2}, may-alias: {10,13}]
  %14 = xla_tuple %s11, %s12, %s13
  %s15 = sld [smem:[#allocation0]]
  $region82: #{tpu_custom_call.1} parent=0
    _
  %s17 = ssub.s32 1, %s15
  %s18 = scalar_select 0, %s17, %s15
  $region1: #{tpu_custom_call.1} parent=0
    #allocation4 [shape = 'u8[8192]{0}', space=vmem, size = 0x2000, scoped, tag = 'input window, operand 9, single buffered']
    #allocation5 [shape = 's32[1]{0}', space=sflag, size = 0x4, scoped, tag = 'scoped memory for tpu_custom_call.1']
    #allocation6 [shape = 's32[1]{0}', space=sflag, size = 0x4, scoped, tag = 'scoped memory for tpu_custom_call.1']
    #allocation7 [shape = 'u8[8192]{0}', space=vmem, size = 0x2000, scoped, tag = 'input window, operand 10, single buffered']
    #allocation8 [shape = 's32[1]{0}', space=sflag, size = 0x4, scoped, tag = 'scoped memory for tpu_custom_call.1']
    #allocation9 [shape = 'u8[32768]{0}', space=vmem, size = 0x8000, scoped, tag = 'output window, operand 0, single buffered']
    #allocation10 [shape = 'u8[8192]{0}', space=vmem, size = 0x2000, scoped, tag = 'output window, operand 1, single buffered']
    #allocation11 [shape = 's32[1]{0}', space=sflag, size = 0x4, scoped, tag = 'scoped memory for tpu_custom_call.1']
    #allocation12 [shape = 'u8[8192]{0}', space=vmem, size = 0x2000, scoped, tag = 'output window, operand 2, single buffered']
    %19 = vsyncpa [#allocation5], 0
    %20 = vsyncpa [#allocation8], 0
    %21 = vsyncpa [#allocation6], 0
    %22 = vsyncpa [#allocation11], 0
    // Predicated region
    $region2: #{tpu_custom_call.1} parent=1 // pred_check
      _
    $region3: #{tpu_custom_call.1} parent=1 // pred_check_branch
      %24 = sbr.rel (0) target = $region5
    $region4: #{tpu_custom_call.1} parent=1 // pred_region
      _
    $region5: #{tpu_custom_call.1} parent=1 // pred_fallthru
      _
    // Predicated region
    $region6: #{tpu_custom_call.1} parent=1 // pred_check
      _
    $region7: #{tpu_custom_call.1} parent=1 // pred_check_branch
      %26 = sbr.rel (0) target = $region9
    $region8: #{tpu_custom_call.1} parent=1 // pred_region
      _
    $region9: #{tpu_custom_call.1} parent=1 // pred_fallthru
      _
    // Predicated region
    $region10: #{tpu_custom_call.1} parent=1 // pred_check
      _
    $region11: #{tpu_custom_call.1} parent=1 // pred_check_branch
      %28 = sbr.rel (0) target = $region13
    $region12: #{tpu_custom_call.1} parent=1 // pred_region
      _
    $region13: #{tpu_custom_call.1} parent=1 // pred_fallthru
      _
    // Predicated region
    $region14: #{tpu_custom_call.1} parent=1 // pred_check
      _
    $region15: #{tpu_custom_call.1} parent=1 // pred_check_branch
      %30 = sbr.rel (0) target = $region17
    $region16: #{tpu_custom_call.1} parent=1 // pred_region
      _
    $region17: #{tpu_custom_call.1} parent=1 // pred_fallthru
      _
    // Predicated region
    $region18: #{tpu_custom_call.1} parent=1 // pred_check
      _
    $region19: #{tpu_custom_call.1} parent=1 // pred_check_branch
      %32 = sbr.rel (0) target = $region21
    $region20: #{tpu_custom_call.1} parent=1 // pred_region
      _
    $region21: #{tpu_custom_call.1} parent=1 // pred_fallthru
      _
    // Predicated region
    $region22: #{tpu_custom_call.1} parent=1 // pred_check
      _
    $region23: #{tpu_custom_call.1} parent=1 // pred_check_branch
      %34 = sbr.rel (0) target = $region25
    $region24: #{tpu_custom_call.1} parent=1 // pred_region
      _
    $region25: #{tpu_custom_call.1} parent=1 // pred_fallthru
      _
    // Predicated region
    $region26: #{tpu_custom_call.1} parent=1 // pred_check
      _
    $region27: #{tpu_custom_call.1} parent=1 // pred_check_branch
      %36 = sbr.rel (0) target = $region29
    $region28: #{tpu_custom_call.1} parent=1 // pred_region
      _
    $region29: #{tpu_custom_call.1} parent=1 // pred_fallthru
      _
    // Predicated region
    $region30: #{tpu_custom_call.1} parent=1 // pred_check
      _
    $region31: #{tpu_custom_call.1} parent=1 // pred_check_branch
      %38 = sbr.rel (0) target = $region33
    $region32: #{tpu_custom_call.1} parent=1 // pred_region
      _
    $region33: #{tpu_custom_call.1} parent=1 // pred_fallthru
      _
    // Predicated region
    $region34: #{tpu_custom_call.1} parent=1 // pred_check
      _
    $region35: #{tpu_custom_call.1} parent=1 // pred_check_branch
      %40 = sbr.rel (0) target = $region37
    $region36: #{tpu_custom_call.1} parent=1 // pred_region
      _
    $region37: #{tpu_custom_call.1} parent=1 // pred_fallthru
      _
    // Predicated region
    $region38: #{tpu_custom_call.1} parent=1 // pred_check
      _
    $region39: #{tpu_custom_call.1} parent=1 // pred_check_branch
      %42 = sbr.rel (0) target = $region41
    $region40: #{tpu_custom_call.1} parent=1 // pred_region
      %s44 = ssub.s32 256, 256
      %45 = vsyncadd [#allocation5], %s44
      %s46 = sshll.u32 [#allocation4], 4
      %s47 = int_to_ptr.vmem [resolvable:$true] %s46
      %52 = dma.hbm_to_vmem [thread:$0]  %s9, 256, %s47, [#allocation5], 128, 128, 8
    $region41: #{tpu_custom_call.1} parent=1 // pred_fallthru
      _
    // Predicated region
    $region42: #{tpu_custom_call.1} parent=1 // pred_check
      _
    $region43: #{tpu_custom_call.1} parent=1 // pred_check_branch
      %54 = sbr.rel (0) target = $region45
    $region44: #{tpu_custom_call.1} parent=1 // pred_region
      %s56 = ssub.s32 256, 256
      %57 = vsyncadd [#allocation8], %s56
      %s58 = sshll.u32 [#allocation7], 4
      %s59 = int_to_ptr.vmem [resolvable:$true] %s58
      %64 = dma.hbm_to_vmem [thread:$0]  %s10, 256, %s59, [#allocation8], 128, 128, 8
    $region45: #{tpu_custom_call.1} parent=1 // pred_fallthru
      _
    // Predicated region
    $region46: #{tpu_custom_call.1} parent=1 // pred_check
      _
    $region47: #{tpu_custom_call.1} parent=1 // pred_check_branch
      %66 = sbr.rel (0) target = $region49
    $region48: #{tpu_custom_call.1} parent=1 // pred_region
      %67 = dma.done [#allocation5], 256
    $region49: #{tpu_custom_call.1} parent=1 // pred_fallthru
      _
    // Predicated region
    $region50: #{tpu_custom_call.1} parent=1 // pred_check
      _
    $region51: #{tpu_custom_call.1} parent=1 // pred_check_branch
      %69 = sbr.rel (0) target = $region53
    $region52: #{tpu_custom_call.1} parent=1 // pred_region
      %70 = dma.done [#allocation8], 256
    $region53: #{tpu_custom_call.1} parent=1 // pred_fallthru
      _
    %p72 = scmp.eq.s32.totalorder 0, 0
    // Predicated region
    $region54: #{tpu_custom_call.1} parent=1 // pred_check
      %p73 = pneg %p72
    $region55: #{tpu_custom_call.1} parent=1 // pred_check_branch
      %75 = sbr.rel (%p73) target = $region57
    $region56: #{tpu_custom_call.1} parent=1 // pred_region
      %v76 = vld [vmem:[#allocation4] sm:$0xff]
      %v77 = vld [vmem:[#allocation4 + $0x8] sm:$0xff]
      %vm78 = vcmask 261120
      %79 = vst.msk [vmem:[#allocation10] sm:$0xff] %vm78, %v76
      %80 = vst.msk [vmem:[#allocation10 + $0x8] sm:$0xff] %vm78, %v77
      %v81 = vld [vmem:[#allocation7] sm:$0xff]
      %v82 = vld [vmem:[#allocation7 + $0x8] sm:$0xff]
      %83 = vst.msk [vmem:[#allocation12] sm:$0xff] %vm78, %v81
      %84 = vst.msk [vmem:[#allocation12 + $0x8] sm:$0xff] %vm78, %v82
    $region57: #{tpu_custom_call.1} parent=1 // pred_fallthru
      _
    %v85 = vld [vmem:[%s0] sm:$0xff]
    %v86 = vld [vmem:[%s0 + $0x8] sm:$0xff]
    %v87 = vld [vmem:[%s0 + $0x10] sm:$0xff]
    %v88 = vld [vmem:[%s0 + $0x18] sm:$0xff]
    %v89 = vld [vmem:[%s0 + $0x20] sm:$0xff]
    %v90 = vld [vmem:[%s0 + $0x28] sm:$0xff]
    %v91 = vld [vmem:[%s0 + $0x30] sm:$0xff]
    %v92 = vld [vmem:[%s0 + $0x38] sm:$0xff]
    %v93 = vpack.c.bf16 %v86, %v85
    %v94 = vpack.c.bf16 %v88, %v87
    %v95 = vpack.c.bf16 %v90, %v89
    %v96 = vpack.c.bf16 %v92, %v91
    %v97 = vld [vmem:[%s1] sm:$0xf]
    %v98 = vld [vmem:[%s1 + $0x4] sm:$0xf]
    %v99 = vld [vmem:[%s1 + $0x8] sm:$0xf]
    %v100 = vld [vmem:[%s1 + $0xc] sm:$0xf]
    %v101 = vld [vmem:[%s3] sm:$0x1]
    %v103 = vlaneseq
    %v104 = vshrl.u32 %v103, 7
    %v105 = vsub.s32 0, %v104
    %v106 = vrot.slane %v101, %v105
    %v112 = vunpack.c.l.b16 %v97
    %v113 = vunpack.c.l.b16 %v98
    %v114 = vunpack.c.l.b16 %v99
    %v115 = vunpack.c.l.b16 %v100
    %v116 = vpack.c.b16 %v113, %v112
    %v117 = vpack.c.b16 %v115, %v114
    %vm120 = vcmask 261120
    %v122 = vsel %vm120, %v93, 0
    %v125 = vsel %vm120, %v94, 0
    %v128 = vsel %vm120, %v95, 0
    %v131 = vsel %vm120, %v96, 0
    %133 = vmatprep.subr.bf16.mxu0 0
    %134 = vmatpush1.bf16.msra.mxu0 0
    %135 = vmatprep.subr.bf16.mxu0 0
    %136 = vmatpush1.bf16.msra.mxu0 0
    %137 = vmatprep.subr.bf16.mxu0 0
    %138 = vmatpush1.bf16.msra.mxu0 0
    %139 = vmatprep.subr.bf16.mxu0 0
    %140 = vmatpush1.bf16.msra.mxu0 0
    %141 = vmatprep.subr.bf16.mxu0 0
    %142 = vmatpush1.bf16.msra.mxu0 0
    %143 = vmatprep.subr.bf16.mxu0 0
    %144 = vmatpush1.bf16.msra.mxu0 0
    %145 = vmatprep.subr.bf16.mxu0 0
    %146 = vmatpush1.bf16.msra.mxu0 %v117
    %147 = vmatprep.subr.bf16.mxu0 0
    %148 = vmatpush1.bf16.msra.mxu0 %v116
    %149 = vmatprep.subr.bf16.mxu0 0
    %150 = vmatpush2.bf16.msra.mxu0 0
    %151 = vmatprep.subr.bf16.mxu0 0
    %152 = vmatpush2.bf16.msra.mxu0 0
    %153 = vmatprep.subr.bf16.mxu0 0
    %154 = vmatpush2.bf16.msra.mxu0 0
    %155 = vmatprep.subr.bf16.mxu0 0
    %156 = vmatpush2.bf16.msra.mxu0 0
    %157 = vmatprep.subr.bf16.mxu0 0
    %158 = vmatpush2.bf16.msra.mxu0 0
    %159 = vmatprep.subr.bf16.mxu0 0
    %160 = vmatpush2.bf16.msra.mxu0 0
    %161 = vmatprep.subr.bf16.mxu0 0
    %162 = vmatpush2.bf16.msra.mxu0 0
    %163 = vmatprep.subr.bf16.mxu0 0
    %164 = vmatpush2.bf16.msra.mxu0 0
    %165 = vmatprep.mubr.bf16.mxu0 0
    %166 = vmatmul.mubr.bf16.gmra.mxu0 %v122
    %v167 = vpop.f32.mrf.mxu0
    %v168 = vadd.f32 %v106, %v167
    %v169 = vpop.f32.mrf.mxu0
    %v170 = vpop.f32.mrf.mxu0
    %v171 = vadd.f32 %v106, %v170
    %v172 = vpop.f32.mrf.mxu0
    %173 = vmatprep.mubr.bf16.mxu0 0
    %174 = vmatmul.mubr.bf16.gmra.mxu0 %v125
    %v175 = vpop.f32.mrf.mxu0
    %v176 = vadd.f32 %v106, %v175
    %v177 = vpop.f32.mrf.mxu0
    %v178 = vpop.f32.mrf.mxu0
    %v179 = vadd.f32 %v106, %v178
    %v180 = vpop.f32.mrf.mxu0
    %181 = vmatprep.mubr.bf16.mxu0 0
    %182 = vmatmul.mubr.bf16.gmra.mxu0 %v128
    %v183 = vpop.f32.mrf.mxu0
    %v184 = vadd.f32 %v106, %v183
    %v185 = vpop.f32.mrf.mxu0
    %v186 = vpop.f32.mrf.mxu0
    %v187 = vadd.f32 %v106, %v186
    %v188 = vpop.f32.mrf.mxu0
    %189 = vmatprep.mubr.bf16.mxu0 0
    %190 = vmatmul.mubr.bf16.gmra.mxu0 %v131
    %v191 = vpop.f32.mrf.mxu0
    %v192 = vadd.f32 %v106, %v191
    %v193 = vpop.f32.mrf.mxu0
    %v194 = vpop.f32.mrf.mxu0
    %v195 = vadd.f32 %v106, %v194
    %v196 = vpop.f32.mrf.mxu0
    %197 = vdwg.mxu0
    %198 = vst [vmem:[#allocation2] sm:$0xff] %v168
    %199 = vst [vmem:[#allocation2 + $0x8] sm:$0xff] %v171
    %200 = vst [vmem:[#allocation2 + $0x10] sm:$0xff] %v176
    %201 = vst [vmem:[#allocation2 + $0x18] sm:$0xff] %v179
    %202 = vst [vmem:[#allocation2 + $0x20] sm:$0xff] %v184
    %203 = vst [vmem:[#allocation2 + $0x28] sm:$0xff] %v187
    %204 = vst [vmem:[#allocation2 + $0x30] sm:$0xff] %v192
    %205 = vst [vmem:[#allocation2 + $0x38] sm:$0xff] %v195
    %v206 = vld [vmem:[%s2] sm:$0xf]
    %v207 = vld [vmem:[%s2 + $0x4] sm:$0xf]
    %v208 = vld [vmem:[%s2 + $0x8] sm:$0xf]
    %v209 = vld [vmem:[%s2 + $0xc] sm:$0xf]
    %v210 = vld [vmem:[%s5] sm:$0xf]
    %v211 = vld [vmem:[%s5 + $0x4] sm:$0xf]
    %v212 = vld [vmem:[%s5 + $0x8] sm:$0xf]
    %v213 = vld [vmem:[%s5 + $0xc] sm:$0xf]
    %v214 = vld [vmem:[%s4] sm:$0xf]
    %v215 = vld [vmem:[%s4 + $0x4] sm:$0xf]
    %v216 = vld [vmem:[%s4 + $0x8] sm:$0xf]
    %v217 = vld [vmem:[%s4 + $0xc] sm:$0xf]
    %v218 = vld [vmem:[%s6] sm:$0x1]
    %v220 = vlaneseq
    %v221 = vshrl.u32 %v220, 7
    %v222 = vsub.s32 0, %v221
    %v223 = vrot.slane %v218, %v222
    %v225 = vld [vmem:[#allocation10] sm:$0xff]
    %s226 = scalar_lea.vmem [#allocation10], 8
    %v227 = vld [vmem:[%s226] sm:$0xff]
    %v228 = vld [vmem:[#allocation12] sm:$0xff]
    %s229 = scalar_lea.vmem [#allocation12], 8
    %v230 = vld [vmem:[%s229] sm:$0xff]
    %v231 = vld [vmem:[#allocation2] sm:$0xff]
    %v232 = vpack.c.bf16 %v225, %v225
    %v237 = vunpack.c.l.b16 %v206
    %v238 = vunpack.c.l.b16 %v207
    %v239 = vunpack.c.l.b16 %v208
    %v240 = vunpack.c.l.b16 %v209
    %v241 = vpack.c.b16 %v238, %v237
    %v242 = vpack.c.b16 %v240, %v239
    %v246 = vsel %vm120, %v232, 0
    %248 = vmatprep.subr.bf16.mxu0 0
    %249 = vmatpush1.bf16.msra.mxu0 0
    %250 = vmatprep.subr.bf16.mxu0 0
    %251 = vmatpush1.bf16.msra.mxu0 0
    %252 = vmatprep.subr.bf16.mxu0 0
    %253 = vmatpush1.bf16.msra.mxu0 0
    %254 = vmatprep.subr.bf16.mxu0 0
    %255 = vmatpush1.bf16.msra.mxu0 0
    %256 = vmatprep.subr.bf16.mxu0 0
    %257 = vmatpush1.bf16.msra.mxu0 0
    %258 = vmatprep.subr.bf16.mxu0 0
    %259 = vmatpush1.bf16.msra.mxu0 0
    %260 = vmatprep.subr.bf16.mxu0 0
    %261 = vmatpush1.bf16.msra.mxu0 %v242
    %262 = vmatprep.subr.bf16.mxu0 0
    %263 = vmatpush1.bf16.msra.mxu0 %v241
    %264 = vmatprep.subr.bf16.mxu0 0
    %265 = vmatpush2.bf16.msra.mxu0 0
    %266 = vmatprep.subr.bf16.mxu0 0
    %267 = vmatpush2.bf16.msra.mxu0 0
    %268 = vmatprep.subr.bf16.mxu0 0
    %269 = vmatpush2.bf16.msra.mxu0 0
    %270 = vmatprep.subr.bf16.mxu0 0
    %271 = vmatpush2.bf16.msra.mxu0 0
    %272 = vmatprep.subr.bf16.mxu0 0
    %273 = vmatpush2.bf16.msra.mxu0 0
    %274 = vmatprep.subr.bf16.mxu0 0
    %275 = vmatpush2.bf16.msra.mxu0 0
    %276 = vmatprep.subr.bf16.mxu0 0
    %277 = vmatpush2.bf16.msra.mxu0 0
    %278 = vmatprep.subr.bf16.mxu0 0
    %279 = vmatpush2.bf16.msra.mxu0 0
    %280 = vmatprep.mubr.bf16.mxu0 0
    %281 = vmatmul.mubr.bf16.gmra.mxu0 %v246
    %v282 = vpop.f32.mrf.mxu0
    %v283 = vadd.f32 0.0, %v282
    %v284 = vpop.f32.mrf.mxu0
    %v285 = vpop.f32.mrf.mxu0
    %v286 = vpop.f32.mrf.mxu0
    %287 = vdwg.mxu0
    %v288 = vadd.f32 %v231, %v283
    %v289 = vxor.u32 %v288, 2147483648
    %v290 = vmul.f32 %v289, 1.442695
    %v291 = vpow.pop %v290
    %v292 = vadd.f32 %v291, 1.0
    %v293 = vrcp.pop %v292
    %v294 = vmul.f32 1.0, %v293
    %v295 = vtanh.pop %v288
    %297 = vrot.lane.b32.xlu0 %v228, 32
    %v298 = vpop.permute.xlu0 %297
    %v300 = vmul.f32 %v294, %v298
    %302 = vrot.lane.b32.xlu0 %v295, 32
    %v303 = vpop.permute.xlu0 %302
    %v305 = vmul.f32 %v294, %v303
    %307 = vrot.lane.b32.xlu0 %v305, 32
    %v308 = vpop.permute.xlu0 %307
    %v310 = vadd.f32 %v300, %v308
    %v311 = vtanh.pop %v310
    %313 = vrot.lane.b32.xlu0 %v311, 32
    %v314 = vpop.permute.xlu0 %313
    %v316 = vmul.f32 %v294, %v314
    %v317 = vld [vmem:[#allocation2 + $0x8] sm:$0xff]
    %v318 = vpack.c.bf16 %v316, %v316
    %320 = vrot.lane.b32.xlu0 %v318, 64
    %v321 = vpop.permute.xlu0 %320
    %v323 = vsel %vm120, %v321, 0
    %325 = vmatprep.subr.bf16.mxu0 0
    %326 = vmatpush1.bf16.msra.mxu0 0
    %327 = vmatprep.subr.bf16.mxu0 0
    %328 = vmatpush1.bf16.msra.mxu0 0
    %329 = vmatprep.subr.bf16.mxu0 0
    %330 = vmatpush1.bf16.msra.mxu0 0
    %331 = vmatprep.subr.bf16.mxu0 0
    %332 = vmatpush1.bf16.msra.mxu0 0
    %333 = vmatprep.subr.bf16.mxu0 0
    %334 = vmatpush1.bf16.msra.mxu0 0
    %335 = vmatprep.subr.bf16.mxu0 0
    %336 = vmatpush1.bf16.msra.mxu0 0
    %337 = vmatprep.subr.bf16.mxu0 0
    %338 = vmatpush1.bf16.msra.mxu0 %v242
    %339 = vmatprep.subr.bf16.mxu0 0
    %340 = vmatpush1.bf16.msra.mxu0 %v241
    %341 = vmatprep.subr.bf16.mxu0 0
    %342 = vmatpush2.bf16.msra.mxu0 0
    %343 = vmatprep.subr.bf16.mxu0 0
    %344 = vmatpush2.bf16.msra.mxu0 0
    %345 = vmatprep.subr.bf16.mxu0 0
    %346 = vmatpush2.bf16.msra.mxu0 0
    %347 = vmatprep.subr.bf16.mxu0 0
    %348 = vmatpush2.bf16.msra.mxu0 0
    %349 = vmatprep.subr.bf16.mxu0 0
    %350 = vmatpush2.bf16.msra.mxu0 0
    %351 = vmatprep.subr.bf16.mxu0 0
    %352 = vmatpush2.bf16.msra.mxu0 0
    %353 = vmatprep.subr.bf16.mxu0 0
    %354 = vmatpush2.bf16.msra.mxu0 0
    %355 = vmatprep.subr.bf16.mxu0 0
    %356 = vmatpush2.bf16.msra.mxu0 0
    %357 = vmatprep.mubr.bf16.mxu0 0
    %358 = vmatmul.mubr.bf16.gmra.mxu0 %v323
    %v359 = vpop.f32.mrf.mxu0
    %v360 = vadd.f32 0.0, %v359
    %v361 = vpop.f32.mrf.mxu0
    %v362 = vpop.f32.mrf.mxu0
    %v363 = vpop.f32.mrf.mxu0
    %364 = vdwg.mxu0
    %v365 = vadd.f32 %v317, %v360
    %v366 = vxor.u32 %v365, 2147483648
    %v367 = vmul.f32 %v366, 1.442695
    %v368 = vpow.pop %v367
    %v369 = vadd.f32 %v368, 1.0
    %v370 = vrcp.pop %v369
    %v371 = vmul.f32 1.0, %v370
    %v372 = vtanh.pop %v365
    %v373 = vmul.f32 %v371, %v310
    %375 = vrot.lane.b32.xlu0 %v372, 32
    %v376 = vpop.permute.xlu0 %375
    %v378 = vmul.f32 %v371, %v376
    %380 = vrot.lane.b32.xlu0 %v378, 32
    %v381 = vpop.permute.xlu0 %380
    %v383 = vadd.f32 %v373, %v381
    %v384 = vtanh.pop %v383
    %386 = vrot.lane.b32.xlu0 %v384, 32
    %v387 = vpop.permute.xlu0 %386
    %v389 = vmul.f32 %v371, %v387
    %v390 = vpack.c.bf16 %v227, %v227
    %v395 = vunpack.c.l.b16 %v210
    %v396 = vunpack.c.l.b16 %v211
    %v397 = vunpack.c.l.b16 %v212
    %v398 = vunpack.c.l.b16 %v213
    %v399 = vpack.c.b16 %v396, %v395
    %v400 = vpack.c.b16 %v398, %v397
    %v404 = vsel %vm120, %v390, 0
    %406 = vmatprep.subr.bf16.mxu0 0
    %407 = vmatpush1.bf16.msra.mxu0 0
    %408 = vmatprep.subr.bf16.mxu0 0
    %409 = vmatpush1.bf16.msra.mxu0 0
    %410 = vmatprep.subr.bf16.mxu0 0
    %411 = vmatpush1.bf16.msra.mxu0 0
    %412 = vmatprep.subr.bf16.mxu0 0
    %413 = vmatpush1.bf16.msra.mxu0 0
    %414 = vmatprep.subr.bf16.mxu0 0
    %415 = vmatpush1.bf16.msra.mxu0 0
    %416 = vmatprep.subr.bf16.mxu0 0
    %417 = vmatpush1.bf16.msra.mxu0 0
    %418 = vmatprep.subr.bf16.mxu0 0
    %419 = vmatpush1.bf16.msra.mxu0 %v400
    %420 = vmatprep.subr.bf16.mxu0 0
    %421 = vmatpush1.bf16.msra.mxu0 %v399
    %422 = vmatprep.subr.bf16.mxu0 0
    %423 = vmatpush2.bf16.msra.mxu0 0
    %424 = vmatprep.subr.bf16.mxu0 0
    %425 = vmatpush2.bf16.msra.mxu0 0
    %426 = vmatprep.subr.bf16.mxu0 0
    %427 = vmatpush2.bf16.msra.mxu0 0
    %428 = vmatprep.subr.bf16.mxu0 0
    %429 = vmatpush2.bf16.msra.mxu0 0
    %430 = vmatprep.subr.bf16.mxu0 0
    %431 = vmatpush2.bf16.msra.mxu0 0
    %432 = vmatprep.subr.bf16.mxu0 0
    %433 = vmatpush2.bf16.msra.mxu0 0
    %434 = vmatprep.subr.bf16.mxu0 0
    %435 = vmatpush2.bf16.msra.mxu0 0
    %436 = vmatprep.subr.bf16.mxu0 0
    %437 = vmatpush2.bf16.msra.mxu0 0
    %438 = vmatprep.mubr.bf16.mxu0 0
    %439 = vmatmul.mubr.bf16.gmra.mxu0 %v404
    %v440 = vpop.f32.mrf.mxu0
    %v441 = vadd.f32 0.0, %v440
    %v442 = vpop.f32.mrf.mxu0
    %v443 = vpop.f32.mrf.mxu0
    %v444 = vpop.f32.mrf.mxu0
    %445 = vdwg.mxu0
    %v450 = vunpack.c.l.b16 %v214
    %v451 = vunpack.c.l.b16 %v215
    %v452 = vunpack.c.l.b16 %v216
    %v453 = vunpack.c.l.b16 %v217
    %v454 = vpack.c.b16 %v451, %v450
    %v455 = vpack.c.b16 %v453, %v452
    %458 = vmatprep.subr.bf16.mxu0 0
    %459 = vmatpush1.bf16.msra.mxu0 0
    %460 = vmatprep.subr.bf16.mxu0 0
    %461 = vmatpush1.bf16.msra.mxu0 0
    %462 = vmatprep.subr.bf16.mxu0 0
    %463 = vmatpush1.bf16.msra.mxu0 0
    %464 = vmatprep.subr.bf16.mxu0 0
    %465 = vmatpush1.bf16.msra.mxu0 0
    %466 = vmatprep.subr.bf16.mxu0 0
    %467 = vmatpush1.bf16.msra.mxu0 0
    %468 = vmatprep.subr.bf16.mxu0 0
    %469 = vmatpush1.bf16.msra.mxu0 0
    %470 = vmatprep.subr.bf16.mxu0 0
    %471 = vmatpush1.bf16.msra.mxu0 %v455
    %472 = vmatprep.subr.bf16.mxu0 0
    %473 = vmatpush1.bf16.msra.mxu0 %v454
    %474 = vmatprep.subr.bf16.mxu0 0
    %475 = vmatpush2.bf16.msra.mxu0 0
    %476 = vmatprep.subr.bf16.mxu0 0
    %477 = vmatpush2.bf16.msra.mxu0 0
    %478 = vmatprep.subr.bf16.mxu0 0
    %479 = vmatpush2.bf16.msra.mxu0 0
    %480 = vmatprep.subr.bf16.mxu0 0
    %481 = vmatpush2.bf16.msra.mxu0 0
    %482 = vmatprep.subr.bf16.mxu0 0
    %483 = vmatpush2.bf16.msra.mxu0 0
    %484 = vmatprep.subr.bf16.mxu0 0
    %485 = vmatpush2.bf16.msra.mxu0 0
    %486 = vmatprep.subr.bf16.mxu0 0
    %487 = vmatpush2.bf16.msra.mxu0 0
    %488 = vmatprep.subr.bf16.mxu0 0
    %489 = vmatpush2.bf16.msra.mxu0 0
    %490 = vmatprep.mubr.bf16.mxu0 0
    %491 = vmatmul.mubr.bf16.gmra.mxu0 %v323
    %v492 = vpop.f32.mrf.mxu0
    %v493 = vadd.f32 %v441, %v492
    %v494 = vpop.f32.mrf.mxu0
    %v495 = vpop.f32.mrf.mxu0
    %v496 = vpop.f32.mrf.mxu0
    %497 = vdwg.mxu0
    %v498 = vadd.f32 %v493, %v223
    %v499 = vxor.u32 %v498, 2147483648
    %v500 = vmul.f32 %v499, 1.442695
    %v501 = vpow.pop %v500
    %v502 = vadd.f32 %v501, 1.0
    %v503 = vrcp.pop %v502
    %v504 = vmul.f32 1.0, %v503
    %v505 = vtanh.pop %v498
    %507 = vrot.lane.b32.xlu0 %v230, 32
    %v508 = vpop.permute.xlu0 %507
    %v510 = vmul.f32 %v504, %v508
    %512 = vrot.lane.b32.xlu0 %v505, 32
    %v513 = vpop.permute.xlu0 %512
    %v515 = vmul.f32 %v504, %v513
    %517 = vrot.lane.b32.xlu0 %v515, 32
    %v518 = vpop.permute.xlu0 %517
    %v520 = vadd.f32 %v510, %v518
    %v521 = vtanh.pop %v520
    %523 = vrot.lane.b32.xlu0 %v521, 32
    %v524 = vpop.permute.xlu0 %523
    %v526 = vmul.f32 %v504, %v524
    %528 = vrot.lane.b32.xlu0 %v526, 64
    %v529 = vpop.permute.xlu0 %528
    %531 = vst.msk [vmem:[#allocation3] sm:$0xff] %vm120, %v529
    %v532 = vld [vmem:[#allocation2 + $0x10] sm:$0xff]
    %v533 = vpack.c.bf16 %v389, %v389
    %535 = vrot.lane.b32.xlu0 %v533, 64
    %v536 = vpop.permute.xlu0 %535
    %v538 = vsel %vm120, %v536, 0
    %540 = vmatprep.subr.bf16.mxu0 0
    %541 = vmatpush1.bf16.msra.mxu0 0
    %542 = vmatprep.subr.bf16.mxu0 0
    %543 = vmatpush1.bf16.msra.mxu0 0
    %544 = vmatprep.subr.bf16.mxu0 0
    %545 = vmatpush1.bf16.msra.mxu0 0
    %546 = vmatprep.subr.bf16.mxu0 0
    %547 = vmatpush1.bf16.msra.mxu0 0
    %548 = vmatprep.subr.bf16.mxu0 0
    %549 = vmatpush1.bf16.msra.mxu0 0
    %550 = vmatprep.subr.bf16.mxu0 0
    %551 = vmatpush1.bf16.msra.mxu0 0
    %552 = vmatprep.subr.bf16.mxu0 0
    %553 = vmatpush1.bf16.msra.mxu0 %v242
    %554 = vmatprep.subr.bf16.mxu0 0
    %555 = vmatpush1.bf16.msra.mxu0 %v241
    %556 = vmatprep.subr.bf16.mxu0 0
    %557 = vmatpush2.bf16.msra.mxu0 0
    %558 = vmatprep.subr.bf16.mxu0 0
    %559 = vmatpush2.bf16.msra.mxu0 0
    %560 = vmatprep.subr.bf16.mxu0 0
    %561 = vmatpush2.bf16.msra.mxu0 0
    %562 = vmatprep.subr.bf16.mxu0 0
    %563 = vmatpush2.bf16.msra.mxu0 0
    %564 = vmatprep.subr.bf16.mxu0 0
    %565 = vmatpush2.bf16.msra.mxu0 0
    %566 = vmatprep.subr.bf16.mxu0 0
    %567 = vmatpush2.bf16.msra.mxu0 0
    %568 = vmatprep.subr.bf16.mxu0 0
    %569 = vmatpush2.bf16.msra.mxu0 0
    %570 = vmatprep.subr.bf16.mxu0 0
    %571 = vmatpush2.bf16.msra.mxu0 0
    %572 = vmatprep.mubr.bf16.mxu0 0
    %573 = vmatmul.mubr.bf16.gmra.mxu0 %v538
    %v574 = vpop.f32.mrf.mxu0
    %v575 = vadd.f32 0.0, %v574
    %v576 = vpop.f32.mrf.mxu0
    %v577 = vpop.f32.mrf.mxu0
    %v578 = vpop.f32.mrf.mxu0
    %579 = vdwg.mxu0
    %v580 = vadd.f32 %v532, %v575
    %v581 = vxor.u32 %v580, 2147483648
    %v582 = vmul.f32 %v581, 1.442695
    %v583 = vpow.pop %v582
    %v584 = vadd.f32 %v583, 1.0
    %v585 = vrcp.pop %v584
    %v586 = vmul.f32 1.0, %v585
    %v587 = vtanh.pop %v580
    %v588 = vmul.f32 %v586, %v383
    %590 = vrot.lane.b32.xlu0 %v587, 32
    %v591 = vpop.permute.xlu0 %590
    %v593 = vmul.f32 %v586, %v591
    %595 = vrot.lane.b32.xlu0 %v593, 32
    %v596 = vpop.permute.xlu0 %595
    %v598 = vadd.f32 %v588, %v596
    %v599 = vtanh.pop %v598
    %601 = vrot.lane.b32.xlu0 %v599, 32
    %v602 = vpop.permute.xlu0 %601
    %v604 = vmul.f32 %v586, %v602
    %v605 = vpack.c.bf16 %v526, %v526
    %607 = vrot.lane.b32.xlu0 %v605, 64
    %v608 = vpop.permute.xlu0 %607
    %v610 = vsel %vm120, %v608, 0
    %612 = vmatprep.subr.bf16.mxu0 0
    %613 = vmatpush1.bf16.msra.mxu0 0
    %614 = vmatprep.subr.bf16.mxu0 0
    %615 = vmatpush1.bf16.msra.mxu0 0
    %616 = vmatprep.subr.bf16.mxu0 0
    %617 = vmatpush1.bf16.msra.mxu0 0
    %618 = vmatprep.subr.bf16.mxu0 0
    %619 = vmatpush1.bf16.msra.mxu0 0
    %620 = vmatprep.subr.bf16.mxu0 0
    %621 = vmatpush1.bf16.msra.mxu0 0
    %622 = vmatprep.subr.bf16.mxu0 0
    %623 = vmatpush1.bf16.msra.mxu0 0
    %624 = vmatprep.subr.bf16.mxu0 0
    %625 = vmatpush1.bf16.msra.mxu0 %v400
    %626 = vmatprep.subr.bf16.mxu0 0
    %627 = vmatpush1.bf16.msra.mxu0 %v399
    %628 = vmatprep.subr.bf16.mxu0 0
    %629 = vmatpush2.bf16.msra.mxu0 0
    %630 = vmatprep.subr.bf16.mxu0 0
    %631 = vmatpush2.bf16.msra.mxu0 0
    %632 = vmatprep.subr.bf16.mxu0 0
    %633 = vmatpush2.bf16.msra.mxu0 0
    %634 = vmatprep.subr.bf16.mxu0 0
    %635 = vmatpush2.bf16.msra.mxu0 0
    %636 = vmatprep.subr.bf16.mxu0 0
    %637 = vmatpush2.bf16.msra.mxu0 0
    %638 = vmatprep.subr.bf16.mxu0 0
    %639 = vmatpush2.bf16.msra.mxu0 0
    %640 = vmatprep.subr.bf16.mxu0 0
    %641 = vmatpush2.bf16.msra.mxu0 0
    %642 = vmatprep.subr.bf16.mxu0 0
    %643 = vmatpush2.bf16.msra.mxu0 0
    %644 = vmatprep.mubr.bf16.mxu0 0
    %645 = vmatmul.mubr.bf16.gmra.mxu0 %v610
    %v646 = vpop.f32.mrf.mxu0
    %v647 = vadd.f32 0.0, %v646
    %v648 = vpop.f32.mrf.mxu0
    %v649 = vpop.f32.mrf.mxu0
    %v650 = vpop.f32.mrf.mxu0
    %651 = vdwg.mxu0
    %652 = vmatprep.subr.bf16.mxu0 0
    %653 = vmatpush1.bf16.msra.mxu0 0
    %654 = vmatprep.subr.bf16.mxu0 0
    %655 = vmatpush1.bf16.msra.mxu0 0
    %656 = vmatprep.subr.bf16.mxu0 0
    %657 = vmatpush1.bf16.msra.mxu0 0
    %658 = vmatprep.subr.bf16.mxu0 0
    %659 = vmatpush1.bf16.msra.mxu0 0
    %660 = vmatprep.subr.bf16.mxu0 0
    %661 = vmatpush1.bf16.msra.mxu0 0
    %662 = vmatprep.subr.bf16.mxu0 0
    %663 = vmatpush1.bf16.msra.mxu0 0
    %664 = vmatprep.subr.bf16.mxu0 0
    %665 = vmatpush1.bf16.msra.mxu0 %v455
    %666 = vmatprep.subr.bf16.mxu0 0
    %667 = vmatpush1.bf16.msra.mxu0 %v454
    %668 = vmatprep.subr.bf16.mxu0 0
    %669 = vmatpush2.bf16.msra.mxu0 0
    %670 = vmatprep.subr.bf16.mxu0 0
    %671 = vmatpush2.bf16.msra.mxu0 0
    %672 = vmatprep.subr.bf16.mxu0 0
    %673 = vmatpush2.bf16.msra.mxu0 0
    %674 = vmatprep.subr.bf16.mxu0 0
    %675 = vmatpush2.bf16.msra.mxu0 0
    %676 = vmatprep.subr.bf16.mxu0 0
    %677 = vmatpush2.bf16.msra.mxu0 0
    %678 = vmatprep.subr.bf16.mxu0 0
    %679 = vmatpush2.bf16.msra.mxu0 0
    %680 = vmatprep.subr.bf16.mxu0 0
    %681 = vmatpush2.bf16.msra.mxu0 0
    %682 = vmatprep.subr.bf16.mxu0 0
    %683 = vmatpush2.bf16.msra.mxu0 0
    %684 = vmatprep.mubr.bf16.mxu0 0
    %685 = vmatmul.mubr.bf16.gmra.mxu0 %v538
    %v686 = vpop.f32.mrf.mxu0
    %v687 = vadd.f32 %v647, %v686
    %v688 = vpop.f32.mrf.mxu0
    %v689 = vpop.f32.mrf.mxu0
    %v690 = vpop.f32.mrf.mxu0
    %691 = vdwg.mxu0
    %v692 = vadd.f32 %v687, %v223
    %v693 = vxor.u32 %v692, 2147483648
    %v694 = vmul.f32 %v693, 1.442695
    %v695 = vpow.pop %v694
    %v696 = vadd.f32 %v695, 1.0
    %v697 = vrcp.pop %v696
    %v698 = vmul.f32 1.0, %v697
    %v699 = vtanh.pop %v692
    %v700 = vmul.f32 %v698, %v520
    %702 = vrot.lane.b32.xlu0 %v699, 32
    %v703 = vpop.permute.xlu0 %702
    %v705 = vmul.f32 %v698, %v703
    %707 = vrot.lane.b32.xlu0 %v705, 32
    %v708 = vpop.permute.xlu0 %707
    %v710 = vadd.f32 %v700, %v708
    %v711 = vtanh.pop %v710
    %713 = vrot.lane.b32.xlu0 %v711, 32
    %v714 = vpop.permute.xlu0 %713
    %v716 = vmul.f32 %v698, %v714
    %718 = vrot.lane.b32.xlu0 %v716, 64
    %v719 = vpop.permute.xlu0 %718
    %721 = vst.msk [vmem:[#allocation3 + $0x8] sm:$0xff] %vm120, %v719
    %v722 = vld [vmem:[#allocation2 + $0x18] sm:$0xff]
    %v723 = vpack.c.bf16 %v604, %v604
    %725 = vrot.lane.b32.xlu0 %v723, 64
    %v726 = vpop.permute.xlu0 %725
    %v728 = vsel %vm120, %v726, 0
    %730 = vmatprep.subr.bf16.mxu0 0
    %731 = vmatpush1.bf16.msra.mxu0 0
    %732 = vmatprep.subr.bf16.mxu0 0
    %733 = vmatpush1.bf16.msra.mxu0 0
    %734 = vmatprep.subr.bf16.mxu0 0
    %735 = vmatpush1.bf16.msra.mxu0 0
    %736 = vmatprep.subr.bf16.mxu0 0
    %737 = vmatpush1.bf16.msra.mxu0 0
    %738 = vmatprep.subr.bf16.mxu0 0
    %739 = vmatpush1.bf16.msra.mxu0 0
    %740 = vmatprep.subr.bf16.mxu0 0
    %741 = vmatpush1.bf16.msra.mxu0 0
    %742 = vmatprep.subr.bf16.mxu0 0
    %743 = vmatpush1.bf16.msra.mxu0 %v242
    %744 = vmatprep.subr.bf16.mxu0 0
    %745 = vmatpush1.bf16.msra.mxu0 %v241
    %746 = vmatprep.subr.bf16.mxu0 0
    %747 = vmatpush2.bf16.msra.mxu0 0
    %748 = vmatprep.subr.bf16.mxu0 0
    %749 = vmatpush2.bf16.msra.mxu0 0
    %750 = vmatprep.subr.bf16.mxu0 0
    %751 = vmatpush2.bf16.msra.mxu0 0
    %752 = vmatprep.subr.bf16.mxu0 0
    %753 = vmatpush2.bf16.msra.mxu0 0
    %754 = vmatprep.subr.bf16.mxu0 0
    %755 = vmatpush2.bf16.msra.mxu0 0
    %756 = vmatprep.subr.bf16.mxu0 0
    %757 = vmatpush2.bf16.msra.mxu0 0
    %758 = vmatprep.subr.bf16.mxu0 0
    %759 = vmatpush2.bf16.msra.mxu0 0
    %760 = vmatprep.subr.bf16.mxu0 0
    %761 = vmatpush2.bf16.msra.mxu0 0
    %762 = vmatprep.mubr.bf16.mxu0 0
    %763 = vmatmul.mubr.bf16.gmra.mxu0 %v728
    %v764 = vpop.f32.mrf.mxu0
    %v765 = vadd.f32 0.0, %v764
    %v766 = vpop.f32.mrf.mxu0
    %v767 = vpop.f32.mrf.mxu0
    %v768 = vpop.f32.mrf.mxu0
    %769 = vdwg.mxu0
    %v770 = vadd.f32 %v722, %v765
    %v771 = vxor.u32 %v770, 2147483648
    %v772 = vmul.f32 %v771, 1.442695
    %v773 = vpow.pop %v772
    %v774 = vadd.f32 %v773, 1.0
    %v775 = vrcp.pop %v774
    %v776 = vmul.f32 1.0, %v775
    %v777 = vtanh.pop %v770
    %v778 = vmul.f32 %v776, %v598
    %780 = vrot.lane.b32.xlu0 %v777, 32
    %v781 = vpop.permute.xlu0 %780
    %v783 = vmul.f32 %v776, %v781
    %785 = vrot.lane.b32.xlu0 %v783, 32
    %v786 = vpop.permute.xlu0 %785
    %v788 = vadd.f32 %v778, %v786
    %v789 = vtanh.pop %v788
    %791 = vrot.lane.b32.xlu0 %v789, 32
    %v792 = vpop.permute.xlu0 %791
    %v794 = vmul.f32 %v776, %v792
    %v795 = vpack.c.bf16 %v716, %v716
    %797 = vrot.lane.b32.xlu0 %v795, 64
    %v798 = vpop.permute.xlu0 %797
    %v800 = vsel %vm120, %v798, 0
    %802 = vmatprep.subr.bf16.mxu0 0
    %803 = vmatpush1.bf16.msra.mxu0 0
    %804 = vmatprep.subr.bf16.mxu0 0
    %805 = vmatpush1.bf16.msra.mxu0 0
    %806 = vmatprep.subr.bf16.mxu0 0
    %807 = vmatpush1.bf16.msra.mxu0 0
    %808 = vmatprep.subr.bf16.mxu0 0
    %809 = vmatpush1.bf16.msra.mxu0 0
    %810 = vmatprep.subr.bf16.mxu0 0
    %811 = vmatpush1.bf16.msra.mxu0 0
    %812 = vmatprep.subr.bf16.mxu0 0
    %813 = vmatpush1.bf16.msra.mxu0 0
    %814 = vmatprep.subr.bf16.mxu0 0
    %815 = vmatpush1.bf16.msra.mxu0 %v400
    %816 = vmatprep.subr.bf16.mxu0 0
    %817 = vmatpush1.bf16.msra.mxu0 %v399
    %818 = vmatprep.subr.bf16.mxu0 0
    %819 = vmatpush2.bf16.msra.mxu0 0
    %820 = vmatprep.subr.bf16.mxu0 0
    %821 = vmatpush2.bf16.msra.mxu0 0
    %822 = vmatprep.subr.bf16.mxu0 0
    %823 = vmatpush2.bf16.msra.mxu0 0
    %824 = vmatprep.subr.bf16.mxu0 0
    %825 = vmatpush2.bf16.msra.mxu0 0
    %826 = vmatprep.subr.bf16.mxu0 0
    %827 = vmatpush2.bf16.msra.mxu0 0
    %828 = vmatprep.subr.bf16.mxu0 0
    %829 = vmatpush2.bf16.msra.mxu0 0
    %830 = vmatprep.subr.bf16.mxu0 0
    %831 = vmatpush2.bf16.msra.mxu0 0
    %832 = vmatprep.subr.bf16.mxu0 0
    %833 = vmatpush2.bf16.msra.mxu0 0
    %834 = vmatprep.mubr.bf16.mxu0 0
    %835 = vmatmul.mubr.bf16.gmra.mxu0 %v800
    %v836 = vpop.f32.mrf.mxu0
    %v837 = vadd.f32 0.0, %v836
    %v838 = vpop.f32.mrf.mxu0
    %v839 = vpop.f32.mrf.mxu0
    %v840 = vpop.f32.mrf.mxu0
    %841 = vdwg.mxu0
    %842 = vmatprep.subr.bf16.mxu0 0
    %843 = vmatpush1.bf16.msra.mxu0 0
    %844 = vmatprep.subr.bf16.mxu0 0
    %845 = vmatpush1.bf16.msra.mxu0 0
    %846 = vmatprep.subr.bf16.mxu0 0
    %847 = vmatpush1.bf16.msra.mxu0 0
    %848 = vmatprep.subr.bf16.mxu0 0
    %849 = vmatpush1.bf16.msra.mxu0 0
    %850 = vmatprep.subr.bf16.mxu0 0
    %851 = vmatpush1.bf16.msra.mxu0 0
    %852 = vmatprep.subr.bf16.mxu0 0
    %853 = vmatpush1.bf16.msra.mxu0 0
    %854 = vmatprep.subr.bf16.mxu0 0
    %855 = vmatpush1.bf16.msra.mxu0 %v455
    %856 = vmatprep.subr.bf16.mxu0 0
    %857 = vmatpush1.bf16.msra.mxu0 %v454
    %858 = vmatprep.subr.bf16.mxu0 0
    %859 = vmatpush2.bf16.msra.mxu0 0
    %860 = vmatprep.subr.bf16.mxu0 0
    %861 = vmatpush2.bf16.msra.mxu0 0
    %862 = vmatprep.subr.bf16.mxu0 0
    %863 = vmatpush2.bf16.msra.mxu0 0
    %864 = vmatprep.subr.bf16.mxu0 0
    %865 = vmatpush2.bf16.msra.mxu0 0
    %866 = vmatprep.subr.bf16.mxu0 0
    %867 = vmatpush2.bf16.msra.mxu0 0
    %868 = vmatprep.subr.bf16.mxu0 0
    %869 = vmatpush2.bf16.msra.mxu0 0
    %870 = vmatprep.subr.bf16.mxu0 0
    %871 = vmatpush2.bf16.msra.mxu0 0
    %872 = vmatprep.subr.bf16.mxu0 0
    %873 = vmatpush2.bf16.msra.mxu0 0
    %874 = vmatprep.mubr.bf16.mxu0 0
    %875 = vmatmul.mubr.bf16.gmra.mxu0 %v728
    %v876 = vpop.f32.mrf.mxu0
    %v877 = vadd.f32 %v837, %v876
    %v878 = vpop.f32.mrf.mxu0
    %v879 = vpop.f32.mrf.mxu0
    %v880 = vpop.f32.mrf.mxu0
    %881 = vdwg.mxu0
    %v882 = vadd.f32 %v877, %v223
    %v883 = vxor.u32 %v882, 2147483648
    %v884 = vmul.f32 %v883, 1.442695
    %v885 = vpow.pop %v884
    %v886 = vadd.f32 %v885, 1.0
    %v887 = vrcp.pop %v886
    %v888 = vmul.f32 1.0, %v887
    %v889 = vtanh.pop %v882
    %v890 = vmul.f32 %v888, %v710
    %892 = vrot.lane.b32.xlu0 %v889, 32
    %v893 = vpop.permute.xlu0 %892
    %v895 = vmul.f32 %v888, %v893
    %897 = vrot.lane.b32.xlu0 %v895, 32
    %v898 = vpop.permute.xlu0 %897
    %v900 = vadd.f32 %v890, %v898
    %v901 = vtanh.pop %v900
    %903 = vrot.lane.b32.xlu0 %v901, 32
    %v904 = vpop.permute.xlu0 %903
    %v906 = vmul.f32 %v888, %v904
    %908 = vrot.lane.b32.xlu0 %v906, 64
    %v909 = vpop.permute.xlu0 %908
    %911 = vst.msk [vmem:[#allocation3 + $0x10] sm:$0xff] %vm120, %v909
    %v912 = vld [vmem:[#allocation2 + $0x20] sm:$0xff]
    %v913 = vpack.c.bf16 %v794, %v794
    %915 = vrot.lane.b32.xlu0 %v913, 64
    %v916 = vpop.permute.xlu0 %915
    %v918 = vsel %vm120, %v916, 0
    %920 = vmatprep.subr.bf16.mxu0 0
    %921 = vmatpush1.bf16.msra.mxu0 0
    %922 = vmatprep.subr.bf16.mxu0 0
    %923 = vmatpush1.bf16.msra.mxu0 0
    %924 = vmatprep.subr.bf16.mxu0 0
    %925 = vmatpush1.bf16.msra.mxu0 0
    %926 = vmatprep.subr.bf16.mxu0 0
    %927 = vmatpush1.bf16.msra.mxu0 0
    %928 = vmatprep.subr.bf16.mxu0 0
    %929 = vmatpush1.bf16.msra.mxu0 0
    %930 = vmatprep.subr.bf16.mxu0 0
    %931 = vmatpush1.bf16.msra.mxu0 0
    %932 = vmatprep.subr.bf16.mxu0 0
    %933 = vmatpush1.bf16.msra.mxu0 %v242
    %934 = vmatprep.subr.bf16.mxu0 0
    %935 = vmatpush1.bf16.msra.mxu0 %v241
    %936 = vmatprep.subr.bf16.mxu0 0
    %937 = vmatpush2.bf16.msra.mxu0 0
    %938 = vmatprep.subr.bf16.mxu0 0
    %939 = vmatpush2.bf16.msra.mxu0 0
    %940 = vmatprep.subr.bf16.mxu0 0
    %941 = vmatpush2.bf16.msra.mxu0 0
    %942 = vmatprep.subr.bf16.mxu0 0
    %943 = vmatpush2.bf16.msra.mxu0 0
    %944 = vmatprep.subr.bf16.mxu0 0
    %945 = vmatpush2.bf16.msra.mxu0 0
    %946 = vmatprep.subr.bf16.mxu0 0
    %947 = vmatpush2.bf16.msra.mxu0 0
    %948 = vmatprep.subr.bf16.mxu0 0
    %949 = vmatpush2.bf16.msra.mxu0 0
    %950 = vmatprep.subr.bf16.mxu0 0
    %951 = vmatpush2.bf16.msra.mxu0 0
    %952 = vmatprep.mubr.bf16.mxu0 0
    %953 = vmatmul.mubr.bf16.gmra.mxu0 %v918
    %v954 = vpop.f32.mrf.mxu0
    %v955 = vadd.f32 0.0, %v954
    %v956 = vpop.f32.mrf.mxu0
    %v957 = vpop.f32.mrf.mxu0
    %v958 = vpop.f32.mrf.mxu0
    %959 = vdwg.mxu0
    %v960 = vadd.f32 %v912, %v955
    %v961 = vxor.u32 %v960, 2147483648
    %v962 = vmul.f32 %v961, 1.442695
    %v963 = vpow.pop %v962
    %v964 = vadd.f32 %v963, 1.0
    %v965 = vrcp.pop %v964
    %v966 = vmul.f32 1.0, %v965
    %v967 = vtanh.pop %v960
    %v968 = vmul.f32 %v966, %v788
    %970 = vrot.lane.b32.xlu0 %v967, 32
    %v971 = vpop.permute.xlu0 %970
    %v973 = vmul.f32 %v966, %v971
    %975 = vrot.lane.b32.xlu0 %v973, 32
    %v976 = vpop.permute.xlu0 %975
    %v978 = vadd.f32 %v968, %v976
    %v979 = vtanh.pop %v978
    %981 = vrot.lane.b32.xlu0 %v979, 32
    %v982 = vpop.permute.xlu0 %981
    %v984 = vmul.f32 %v966, %v982
    %v985 = vpack.c.bf16 %v906, %v906
    %987 = vrot.lane.b32.xlu0 %v985, 64
    %v988 = vpop.permute.xlu0 %987
    %v990 = vsel %vm120, %v988, 0
    %992 = vmatprep.subr.bf16.mxu0 0
    %993 = vmatpush1.bf16.msra.mxu0 0
    %994 = vmatprep.subr.bf16.mxu0 0
    %995 = vmatpush1.bf16.msra.mxu0 0
    %996 = vmatprep.subr.bf16.mxu0 0
    %997 = vmatpush1.bf16.msra.mxu0 0
    %998 = vmatprep.subr.bf16.mxu0 0
    %999 = vmatpush1.bf16.msra.mxu0 0
    %1000 = vmatprep.subr.bf16.mxu0 0
    %1001 = vmatpush1.bf16.msra.mxu0 0
    %1002 = vmatprep.subr.bf16.mxu0 0
    %1003 = vmatpush1.bf16.msra.mxu0 0
    %1004 = vmatprep.subr.bf16.mxu0 0
    %1005 = vmatpush1.bf16.msra.mxu0 %v400
    %1006 = vmatprep.subr.bf16.mxu0 0
    %1007 = vmatpush1.bf16.msra.mxu0 %v399
    %1008 = vmatprep.subr.bf16.mxu0 0
    %1009 = vmatpush2.bf16.msra.mxu0 0
    %1010 = vmatprep.subr.bf16.mxu0 0
    %1011 = vmatpush2.bf16.msra.mxu0 0
    %1012 = vmatprep.subr.bf16.mxu0 0
    %1013 = vmatpush2.bf16.msra.mxu0 0
    %1014 = vmatprep.subr.bf16.mxu0 0
    %1015 = vmatpush2.bf16.msra.mxu0 0
    %1016 = vmatprep.subr.bf16.mxu0 0
    %1017 = vmatpush2.bf16.msra.mxu0 0
    %1018 = vmatprep.subr.bf16.mxu0 0
    %1019 = vmatpush2.bf16.msra.mxu0 0
    %1020 = vmatprep.subr.bf16.mxu0 0
    %1021 = vmatpush2.bf16.msra.mxu0 0
    %1022 = vmatprep.subr.bf16.mxu0 0
    %1023 = vmatpush2.bf16.msra.mxu0 0
    %1024 = vmatprep.mubr.bf16.mxu0 0
    %1025 = vmatmul.mubr.bf16.gmra.mxu0 %v990
    %v1026 = vpop.f32.mrf.mxu0
    %v1027 = vadd.f32 0.0, %v1026
    %v1028 = vpop.f32.mrf.mxu0
    %v1029 = vpop.f32.mrf.mxu0
    %v1030 = vpop.f32.mrf.mxu0
    %1031 = vdwg.mxu0
    %1032 = vmatprep.subr.bf16.mxu0 0
    %1033 = vmatpush1.bf16.msra.mxu0 0
    %1034 = vmatprep.subr.bf16.mxu0 0
    %1035 = vmatpush1.bf16.msra.mxu0 0
    %1036 = vmatprep.subr.bf16.mxu0 0
    %1037 = vmatpush1.bf16.msra.mxu0 0
    %1038 = vmatprep.subr.bf16.mxu0 0
    %1039 = vmatpush1.bf16.msra.mxu0 0
    %1040 = vmatprep.subr.bf16.mxu0 0
    %1041 = vmatpush1.bf16.msra.mxu0 0
    %1042 = vmatprep.subr.bf16.mxu0 0
    %1043 = vmatpush1.bf16.msra.mxu0 0
    %1044 = vmatprep.subr.bf16.mxu0 0
    %1045 = vmatpush1.bf16.msra.mxu0 %v455
    %1046 = vmatprep.subr.bf16.mxu0 0
    %1047 = vmatpush1.bf16.msra.mxu0 %v454
    %1048 = vmatprep.subr.bf16.mxu0 0
    %1049 = vmatpush2.bf16.msra.mxu0 0
    %1050 = vmatprep.subr.bf16.mxu0 0
    %1051 = vmatpush2.bf16.msra.mxu0 0
    %1052 = vmatprep.subr.bf16.mxu0 0
    %1053 = vmatpush2.bf16.msra.mxu0 0
    %1054 = vmatprep.subr.bf16.mxu0 0
    %1055 = vmatpush2.bf16.msra.mxu0 0
    %1056 = vmatprep.subr.bf16.mxu0 0
    %1057 = vmatpush2.bf16.msra.mxu0 0
    %1058 = vmatprep.subr.bf16.mxu0 0
    %1059 = vmatpush2.bf16.msra.mxu0 0
    %1060 = vmatprep.subr.bf16.mxu0 0
    %1061 = vmatpush2.bf16.msra.mxu0 0
    %1062 = vmatprep.subr.bf16.mxu0 0
    %1063 = vmatpush2.bf16.msra.mxu0 0
    %1064 = vmatprep.mubr.bf16.mxu0 0
    %1065 = vmatmul.mubr.bf16.gmra.mxu0 %v918
    %v1066 = vpop.f32.mrf.mxu0
    %v1067 = vadd.f32 %v1027, %v1066
    %v1068 = vpop.f32.mrf.mxu0
    %v1069 = vpop.f32.mrf.mxu0
    %v1070 = vpop.f32.mrf.mxu0
    %1071 = vdwg.mxu0
    %v1072 = vadd.f32 %v1067, %v223
    %v1073 = vxor.u32 %v1072, 2147483648
    %v1074 = vmul.f32 %v1073, 1.442695
    %v1075 = vpow.pop %v1074
    %v1076 = vadd.f32 %v1075, 1.0
    %v1077 = vrcp.pop %v1076
    %v1078 = vmul.f32 1.0, %v1077
    %v1079 = vtanh.pop %v1072
    %v1080 = vmul.f32 %v1078, %v900
    %1082 = vrot.lane.b32.xlu0 %v1079, 32
    %v1083 = vpop.permute.xlu0 %1082
    %v1085 = vmul.f32 %v1078, %v1083
    %1087 = vrot.lane.b32.xlu0 %v1085, 32
    %v1088 = vpop.permute.xlu0 %1087
    %v1090 = vadd.f32 %v1080, %v1088
    %v1091 = vtanh.pop %v1090
    %1093 = vrot.lane.b32.xlu0 %v1091, 32
    %v1094 = vpop.permute.xlu0 %1093
    %v1096 = vmul.f32 %v1078, %v1094
    %1098 = vrot.lane.b32.xlu0 %v1096, 64
    %v1099 = vpop.permute.xlu0 %1098
    %1101 = vst.msk [vmem:[#allocation3 + $0x18] sm:$0xff] %vm120, %v1099
    %v1102 = vld [vmem:[#allocation2 + $0x28] sm:$0xff]
    %v1103 = vpack.c.bf16 %v984, %v984
    %1105 = vrot.lane.b32.xlu0 %v1103, 64
    %v1106 = vpop.permute.xlu0 %1105
    %v1108 = vsel %vm120, %v1106, 0
    %1110 = vmatprep.subr.bf16.mxu0 0
    %1111 = vmatpush1.bf16.msra.mxu0 0
    %1112 = vmatprep.subr.bf16.mxu0 0
    %1113 = vmatpush1.bf16.msra.mxu0 0
    %1114 = vmatprep.subr.bf16.mxu0 0
    %1115 = vmatpush1.bf16.msra.mxu0 0
    %1116 = vmatprep.subr.bf16.mxu0 0
    %1117 = vmatpush1.bf16.msra.mxu0 0
    %1118 = vmatprep.subr.bf16.mxu0 0
    %1119 = vmatpush1.bf16.msra.mxu0 0
    %1120 = vmatprep.subr.bf16.mxu0 0
    %1121 = vmatpush1.bf16.msra.mxu0 0
    %1122 = vmatprep.subr.bf16.mxu0 0
    %1123 = vmatpush1.bf16.msra.mxu0 %v242
    %1124 = vmatprep.subr.bf16.mxu0 0
    %1125 = vmatpush1.bf16.msra.mxu0 %v241
    %1126 = vmatprep.subr.bf16.mxu0 0
    %1127 = vmatpush2.bf16.msra.mxu0 0
    %1128 = vmatprep.subr.bf16.mxu0 0
    %1129 = vmatpush2.bf16.msra.mxu0 0
    %1130 = vmatprep.subr.bf16.mxu0 0
    %1131 = vmatpush2.bf16.msra.mxu0 0
    %1132 = vmatprep.subr.bf16.mxu0 0
    %1133 = vmatpush2.bf16.msra.mxu0 0
    %1134 = vmatprep.subr.bf16.mxu0 0
    %1135 = vmatpush2.bf16.msra.mxu0 0
    %1136 = vmatprep.subr.bf16.mxu0 0
    %1137 = vmatpush2.bf16.msra.mxu0 0
    %1138 = vmatprep.subr.bf16.mxu0 0
    %1139 = vmatpush2.bf16.msra.mxu0 0
    %1140 = vmatprep.subr.bf16.mxu0 0
    %1141 = vmatpush2.bf16.msra.mxu0 0
    %1142 = vmatprep.mubr.bf16.mxu0 0
    %1143 = vmatmul.mubr.bf16.gmra.mxu0 %v1108
    %v1144 = vpop.f32.mrf.mxu0
    %v1145 = vadd.f32 0.0, %v1144
    %v1146 = vpop.f32.mrf.mxu0
    %v1147 = vpop.f32.mrf.mxu0
    %v1148 = vpop.f32.mrf.mxu0
    %1149 = vdwg.mxu0
    %v1150 = vadd.f32 %v1102, %v1145
    %v1151 = vxor.u32 %v1150, 2147483648
    %v1152 = vmul.f32 %v1151, 1.442695
    %v1153 = vpow.pop %v1152
    %v1154 = vadd.f32 %v1153, 1.0
    %v1155 = vrcp.pop %v1154
    %v1156 = vmul.f32 1.0, %v1155
    %v1157 = vtanh.pop %v1150
    %v1158 = vmul.f32 %v1156, %v978
    %1160 = vrot.lane.b32.xlu0 %v1157, 32
    %v1161 = vpop.permute.xlu0 %1160
    %v1163 = vmul.f32 %v1156, %v1161
    %1165 = vrot.lane.b32.xlu0 %v1163, 32
    %v1166 = vpop.permute.xlu0 %1165
    %v1168 = vadd.f32 %v1158, %v1166
    %v1169 = vtanh.pop %v1168
    %1171 = vrot.lane.b32.xlu0 %v1169, 32
    %v1172 = vpop.permute.xlu0 %1171
    %v1174 = vmul.f32 %v1156, %v1172
    %v1175 = vpack.c.bf16 %v1096, %v1096
    %1177 = vrot.lane.b32.xlu0 %v1175, 64
    %v1178 = vpop.permute.xlu0 %1177
    %v1180 = vsel %vm120, %v1178, 0
    %1182 = vmatprep.subr.bf16.mxu0 0
    %1183 = vmatpush1.bf16.msra.mxu0 0
    %1184 = vmatprep.subr.bf16.mxu0 0
    %1185 = vmatpush1.bf16.msra.mxu0 0
    %1186 = vmatprep.subr.bf16.mxu0 0
    %1187 = vmatpush1.bf16.msra.mxu0 0
    %1188 = vmatprep.subr.bf16.mxu0 0
    %1189 = vmatpush1.bf16.msra.mxu0 0
    %1190 = vmatprep.subr.bf16.mxu0 0
    %1191 = vmatpush1.bf16.msra.mxu0 0
    %1192 = vmatprep.subr.bf16.mxu0 0
    %1193 = vmatpush1.bf16.msra.mxu0 0
    %1194 = vmatprep.subr.bf16.mxu0 0
    %1195 = vmatpush1.bf16.msra.mxu0 %v400
    %1196 = vmatprep.subr.bf16.mxu0 0
    %1197 = vmatpush1.bf16.msra.mxu0 %v399
    %1198 = vmatprep.subr.bf16.mxu0 0
    %1199 = vmatpush2.bf16.msra.mxu0 0
    %1200 = vmatprep.subr.bf16.mxu0 0
    %1201 = vmatpush2.bf16.msra.mxu0 0
    %1202 = vmatprep.subr.bf16.mxu0 0
    %1203 = vmatpush2.bf16.msra.mxu0 0
    %1204 = vmatprep.subr.bf16.mxu0 0
    %1205 = vmatpush2.bf16.msra.mxu0 0
    %1206 = vmatprep.subr.bf16.mxu0 0
    %1207 = vmatpush2.bf16.msra.mxu0 0
    %1208 = vmatprep.subr.bf16.mxu0 0
    %1209 = vmatpush2.bf16.msra.mxu0 0
    %1210 = vmatprep.subr.bf16.mxu0 0
    %1211 = vmatpush2.bf16.msra.mxu0 0
    %1212 = vmatprep.subr.bf16.mxu0 0
    %1213 = vmatpush2.bf16.msra.mxu0 0
    %1214 = vmatprep.mubr.bf16.mxu0 0
    %1215 = vmatmul.mubr.bf16.gmra.mxu0 %v1180
    %v1216 = vpop.f32.mrf.mxu0
    %v1217 = vadd.f32 0.0, %v1216
    %v1218 = vpop.f32.mrf.mxu0
    %v1219 = vpop.f32.mrf.mxu0
    %v1220 = vpop.f32.mrf.mxu0
    %1221 = vdwg.mxu0
    %1222 = vmatprep.subr.bf16.mxu0 0
    %1223 = vmatpush1.bf16.msra.mxu0 0
    %1224 = vmatprep.subr.bf16.mxu0 0
    %1225 = vmatpush1.bf16.msra.mxu0 0
    %1226 = vmatprep.subr.bf16.mxu0 0
    %1227 = vmatpush1.bf16.msra.mxu0 0
    %1228 = vmatprep.subr.bf16.mxu0 0
    %1229 = vmatpush1.bf16.msra.mxu0 0
    %1230 = vmatprep.subr.bf16.mxu0 0
    %1231 = vmatpush1.bf16.msra.mxu0 0
    %1232 = vmatprep.subr.bf16.mxu0 0
    %1233 = vmatpush1.bf16.msra.mxu0 0
    %1234 = vmatprep.subr.bf16.mxu0 0
    %1235 = vmatpush1.bf16.msra.mxu0 %v455
    %1236 = vmatprep.subr.bf16.mxu0 0
    %1237 = vmatpush1.bf16.msra.mxu0 %v454
    %1238 = vmatprep.subr.bf16.mxu0 0
    %1239 = vmatpush2.bf16.msra.mxu0 0
    %1240 = vmatprep.subr.bf16.mxu0 0
    %1241 = vmatpush2.bf16.msra.mxu0 0
    %1242 = vmatprep.subr.bf16.mxu0 0
    %1243 = vmatpush2.bf16.msra.mxu0 0
    %1244 = vmatprep.subr.bf16.mxu0 0
    %1245 = vmatpush2.bf16.msra.mxu0 0
    %1246 = vmatprep.subr.bf16.mxu0 0
    %1247 = vmatpush2.bf16.msra.mxu0 0
    %1248 = vmatprep.subr.bf16.mxu0 0
    %1249 = vmatpush2.bf16.msra.mxu0 0
    %1250 = vmatprep.subr.bf16.mxu0 0
    %1251 = vmatpush2.bf16.msra.mxu0 0
    %1252 = vmatprep.subr.bf16.mxu0 0
    %1253 = vmatpush2.bf16.msra.mxu0 0
    %1254 = vmatprep.mubr.bf16.mxu0 0
    %1255 = vmatmul.mubr.bf16.gmra.mxu0 %v1108
    %v1256 = vpop.f32.mrf.mxu0
    %v1257 = vadd.f32 %v1217, %v1256
    %v1258 = vpop.f32.mrf.mxu0
    %v1259 = vpop.f32.mrf.mxu0
    %v1260 = vpop.f32.mrf.mxu0
    %1261 = vdwg.mxu0
    %v1262 = vadd.f32 %v1257, %v223
    %v1263 = vxor.u32 %v1262, 2147483648
    %v1264 = vmul.f32 %v1263, 1.442695
    %v1265 = vpow.pop %v1264
    %v1266 = vadd.f32 %v1265, 1.0
    %v1267 = vrcp.pop %v1266
    %v1268 = vmul.f32 1.0, %v1267
    %v1269 = vtanh.pop %v1262
    %v1270 = vmul.f32 %v1268, %v1090
    %1272 = vrot.lane.b32.xlu0 %v1269, 32
    %v1273 = vpop.permute.xlu0 %1272
    %v1275 = vmul.f32 %v1268, %v1273
    %1277 = vrot.lane.b32.xlu0 %v1275, 32
    %v1278 = vpop.permute.xlu0 %1277
    %v1280 = vadd.f32 %v1270, %v1278
    %v1281 = vtanh.pop %v1280
    %1283 = vrot.lane.b32.xlu0 %v1281, 32
    %v1284 = vpop.permute.xlu0 %1283
    %v1286 = vmul.f32 %v1268, %v1284
    %1288 = vrot.lane.b32.xlu0 %v1286, 64
    %v1289 = vpop.permute.xlu0 %1288
    %1291 = vst.msk [vmem:[#allocation3 + $0x20] sm:$0xff] %vm120, %v1289
    %v1292 = vld [vmem:[#allocation2 + $0x30] sm:$0xff]
    %v1293 = vpack.c.bf16 %v1174, %v1174
    %1295 = vrot.lane.b32.xlu0 %v1293, 64
    %v1296 = vpop.permute.xlu0 %1295
    %v1298 = vsel %vm120, %v1296, 0
    %1300 = vmatprep.subr.bf16.mxu0 0
    %1301 = vmatpush1.bf16.msra.mxu0 0
    %1302 = vmatprep.subr.bf16.mxu0 0
    %1303 = vmatpush1.bf16.msra.mxu0 0
    %1304 = vmatprep.subr.bf16.mxu0 0
    %1305 = vmatpush1.bf16.msra.mxu0 0
    %1306 = vmatprep.subr.bf16.mxu0 0
    %1307 = vmatpush1.bf16.msra.mxu0 0
    %1308 = vmatprep.subr.bf16.mxu0 0
    %1309 = vmatpush1.bf16.msra.mxu0 0
    %1310 = vmatprep.subr.bf16.mxu0 0
    %1311 = vmatpush1.bf16.msra.mxu0 0
    %1312 = vmatprep.subr.bf16.mxu0 0
    %1313 = vmatpush1.bf16.msra.mxu0 %v242
    %1314 = vmatprep.subr.bf16.mxu0 0
    %1315 = vmatpush1.bf16.msra.mxu0 %v241
    %1316 = vmatprep.subr.bf16.mxu0 0
    %1317 = vmatpush2.bf16.msra.mxu0 0
    %1318 = vmatprep.subr.bf16.mxu0 0
    %1319 = vmatpush2.bf16.msra.mxu0 0
    %1320 = vmatprep.subr.bf16.mxu0 0
    %1321 = vmatpush2.bf16.msra.mxu0 0
    %1322 = vmatprep.subr.bf16.mxu0 0
    %1323 = vmatpush2.bf16.msra.mxu0 0
    %1324 = vmatprep.subr.bf16.mxu0 0
    %1325 = vmatpush2.bf16.msra.mxu0 0
    %1326 = vmatprep.subr.bf16.mxu0 0
    %1327 = vmatpush2.bf16.msra.mxu0 0
    %1328 = vmatprep.subr.bf16.mxu0 0
    %1329 = vmatpush2.bf16.msra.mxu0 0
    %1330 = vmatprep.subr.bf16.mxu0 0
    %1331 = vmatpush2.bf16.msra.mxu0 0
    %1332 = vmatprep.mubr.bf16.mxu0 0
    %1333 = vmatmul.mubr.bf16.gmra.mxu0 %v1298
    %v1334 = vpop.f32.mrf.mxu0
    %v1335 = vadd.f32 0.0, %v1334
    %v1336 = vpop.f32.mrf.mxu0
    %v1337 = vpop.f32.mrf.mxu0
    %v1338 = vpop.f32.mrf.mxu0
    %1339 = vdwg.mxu0
    %v1340 = vadd.f32 %v1292, %v1335
    %v1341 = vxor.u32 %v1340, 2147483648
    %v1342 = vmul.f32 %v1341, 1.442695
    %v1343 = vpow.pop %v1342
    %v1344 = vadd.f32 %v1343, 1.0
    %v1345 = vrcp.pop %v1344
    %v1346 = vmul.f32 1.0, %v1345
    %v1347 = vtanh.pop %v1340
    %v1348 = vmul.f32 %v1346, %v1168
    %1350 = vrot.lane.b32.xlu0 %v1347, 32
    %v1351 = vpop.permute.xlu0 %1350
    %v1353 = vmul.f32 %v1346, %v1351
    %1355 = vrot.lane.b32.xlu0 %v1353, 32
    %v1356 = vpop.permute.xlu0 %1355
    %v1358 = vadd.f32 %v1348, %v1356
    %v1359 = vtanh.pop %v1358
    %1361 = vrot.lane.b32.xlu0 %v1359, 32
    %v1362 = vpop.permute.xlu0 %1361
    %v1364 = vmul.f32 %v1346, %v1362
    %v1365 = vpack.c.bf16 %v1286, %v1286
    %1367 = vrot.lane.b32.xlu0 %v1365, 64
    %v1368 = vpop.permute.xlu0 %1367
    %v1370 = vsel %vm120, %v1368, 0
    %1372 = vmatprep.subr.bf16.mxu0 0
    %1373 = vmatpush1.bf16.msra.mxu0 0
    %1374 = vmatprep.subr.bf16.mxu0 0
    %1375 = vmatpush1.bf16.msra.mxu0 0
    %1376 = vmatprep.subr.bf16.mxu0 0
    %1377 = vmatpush1.bf16.msra.mxu0 0
    %1378 = vmatprep.subr.bf16.mxu0 0
    %1379 = vmatpush1.bf16.msra.mxu0 0
    %1380 = vmatprep.subr.bf16.mxu0 0
    %1381 = vmatpush1.bf16.msra.mxu0 0
    %1382 = vmatprep.subr.bf16.mxu0 0
    %1383 = vmatpush1.bf16.msra.mxu0 0
    %1384 = vmatprep.subr.bf16.mxu0 0
    %1385 = vmatpush1.bf16.msra.mxu0 %v400
    %1386 = vmatprep.subr.bf16.mxu0 0
    %1387 = vmatpush1.bf16.msra.mxu0 %v399
    %1388 = vmatprep.subr.bf16.mxu0 0
    %1389 = vmatpush2.bf16.msra.mxu0 0
    %1390 = vmatprep.subr.bf16.mxu0 0
    %1391 = vmatpush2.bf16.msra.mxu0 0
    %1392 = vmatprep.subr.bf16.mxu0 0
    %1393 = vmatpush2.bf16.msra.mxu0 0
    %1394 = vmatprep.subr.bf16.mxu0 0
    %1395 = vmatpush2.bf16.msra.mxu0 0
    %1396 = vmatprep.subr.bf16.mxu0 0
    %1397 = vmatpush2.bf16.msra.mxu0 0
    %1398 = vmatprep.subr.bf16.mxu0 0
    %1399 = vmatpush2.bf16.msra.mxu0 0
    %1400 = vmatprep.subr.bf16.mxu0 0
    %1401 = vmatpush2.bf16.msra.mxu0 0
    %1402 = vmatprep.subr.bf16.mxu0 0
    %1403 = vmatpush2.bf16.msra.mxu0 0
    %1404 = vmatprep.mubr.bf16.mxu0 0
    %1405 = vmatmul.mubr.bf16.gmra.mxu0 %v1370
    %v1406 = vpop.f32.mrf.mxu0
    %v1407 = vadd.f32 0.0, %v1406
    %v1408 = vpop.f32.mrf.mxu0
    %v1409 = vpop.f32.mrf.mxu0
    %v1410 = vpop.f32.mrf.mxu0
    %1411 = vdwg.mxu0
    %1412 = vmatprep.subr.bf16.mxu0 0
    %1413 = vmatpush1.bf16.msra.mxu0 0
    %1414 = vmatprep.subr.bf16.mxu0 0
    %1415 = vmatpush1.bf16.msra.mxu0 0
    %1416 = vmatprep.subr.bf16.mxu0 0
    %1417 = vmatpush1.bf16.msra.mxu0 0
    %1418 = vmatprep.subr.bf16.mxu0 0
    %1419 = vmatpush1.bf16.msra.mxu0 0
    %1420 = vmatprep.subr.bf16.mxu0 0
    %1421 = vmatpush1.bf16.msra.mxu0 0
    %1422 = vmatprep.subr.bf16.mxu0 0
    %1423 = vmatpush1.bf16.msra.mxu0 0
    %1424 = vmatprep.subr.bf16.mxu0 0
    %1425 = vmatpush1.bf16.msra.mxu0 %v455
    %1426 = vmatprep.subr.bf16.mxu0 0
    %1427 = vmatpush1.bf16.msra.mxu0 %v454
    %1428 = vmatprep.subr.bf16.mxu0 0
    %1429 = vmatpush2.bf16.msra.mxu0 0
    %1430 = vmatprep.subr.bf16.mxu0 0
    %1431 = vmatpush2.bf16.msra.mxu0 0
    %1432 = vmatprep.subr.bf16.mxu0 0
    %1433 = vmatpush2.bf16.msra.mxu0 0
    %1434 = vmatprep.subr.bf16.mxu0 0
    %1435 = vmatpush2.bf16.msra.mxu0 0
    %1436 = vmatprep.subr.bf16.mxu0 0
    %1437 = vmatpush2.bf16.msra.mxu0 0
    %1438 = vmatprep.subr.bf16.mxu0 0
    %1439 = vmatpush2.bf16.msra.mxu0 0
    %1440 = vmatprep.subr.bf16.mxu0 0
    %1441 = vmatpush2.bf16.msra.mxu0 0
    %1442 = vmatprep.subr.bf16.mxu0 0
    %1443 = vmatpush2.bf16.msra.mxu0 0
    %1444 = vmatprep.mubr.bf16.mxu0 0
    %1445 = vmatmul.mubr.bf16.gmra.mxu0 %v1298
    %v1446 = vpop.f32.mrf.mxu0
    %v1447 = vadd.f32 %v1407, %v1446
    %v1448 = vpop.f32.mrf.mxu0
    %v1449 = vpop.f32.mrf.mxu0
    %v1450 = vpop.f32.mrf.mxu0
    %1451 = vdwg.mxu0
    %v1452 = vadd.f32 %v1447, %v223
    %v1453 = vxor.u32 %v1452, 2147483648
    %v1454 = vmul.f32 %v1453, 1.442695
    %v1455 = vpow.pop %v1454
    %v1456 = vadd.f32 %v1455, 1.0
    %v1457 = vrcp.pop %v1456
    %v1458 = vmul.f32 1.0, %v1457
    %v1459 = vtanh.pop %v1452
    %v1460 = vmul.f32 %v1458, %v1280
    %1462 = vrot.lane.b32.xlu0 %v1459, 32
    %v1463 = vpop.permute.xlu0 %1462
    %v1465 = vmul.f32 %v1458, %v1463
    %1467 = vrot.lane.b32.xlu0 %v1465, 32
    %v1468 = vpop.permute.xlu0 %1467
    %v1470 = vadd.f32 %v1460, %v1468
    %v1471 = vtanh.pop %v1470
    %1473 = vrot.lane.b32.xlu0 %v1471, 32
    %v1474 = vpop.permute.xlu0 %1473
    %v1476 = vmul.f32 %v1458, %v1474
    %1478 = vrot.lane.b32.xlu0 %v1476, 64
    %v1479 = vpop.permute.xlu0 %1478
    %1481 = vst.msk [vmem:[#allocation3 + $0x28] sm:$0xff] %vm120, %v1479
    %v1482 = vld [vmem:[#allocation2 + $0x38] sm:$0xff]
    %v1483 = vpack.c.bf16 %v1364, %v1364
    %1485 = vrot.lane.b32.xlu0 %v1483, 64
    %v1486 = vpop.permute.xlu0 %1485
    %v1488 = vsel %vm120, %v1486, 0
    %1490 = vmatprep.subr.bf16.mxu0 0
    %1491 = vmatpush1.bf16.msra.mxu0 0
    %1492 = vmatprep.subr.bf16.mxu0 0
    %1493 = vmatpush1.bf16.msra.mxu0 0
    %1494 = vmatprep.subr.bf16.mxu0 0
    %1495 = vmatpush1.bf16.msra.mxu0 0
    %1496 = vmatprep.subr.bf16.mxu0 0
    %1497 = vmatpush1.bf16.msra.mxu0 0
    %1498 = vmatprep.subr.bf16.mxu0 0
    %1499 = vmatpush1.bf16.msra.mxu0 0
    %1500 = vmatprep.subr.bf16.mxu0 0
    %1501 = vmatpush1.bf16.msra.mxu0 0
    %1502 = vmatprep.subr.bf16.mxu0 0
    %1503 = vmatpush1.bf16.msra.mxu0 %v242
    %1504 = vmatprep.subr.bf16.mxu0 0
    %1505 = vmatpush1.bf16.msra.mxu0 %v241
    %1506 = vmatprep.subr.bf16.mxu0 0
    %1507 = vmatpush2.bf16.msra.mxu0 0
    %1508 = vmatprep.subr.bf16.mxu0 0
    %1509 = vmatpush2.bf16.msra.mxu0 0
    %1510 = vmatprep.subr.bf16.mxu0 0
    %1511 = vmatpush2.bf16.msra.mxu0 0
    %1512 = vmatprep.subr.bf16.mxu0 0
    %1513 = vmatpush2.bf16.msra.mxu0 0
    %1514 = vmatprep.subr.bf16.mxu0 0
    %1515 = vmatpush2.bf16.msra.mxu0 0
    %1516 = vmatprep.subr.bf16.mxu0 0
    %1517 = vmatpush2.bf16.msra.mxu0 0
    %1518 = vmatprep.subr.bf16.mxu0 0
    %1519 = vmatpush2.bf16.msra.mxu0 0
    %1520 = vmatprep.subr.bf16.mxu0 0
    %1521 = vmatpush2.bf16.msra.mxu0 0
    %1522 = vmatprep.mubr.bf16.mxu0 0
    %1523 = vmatmul.mubr.bf16.gmra.mxu0 %v1488
    %v1524 = vpop.f32.mrf.mxu0
    %v1525 = vadd.f32 0.0, %v1524
    %v1526 = vpop.f32.mrf.mxu0
    %v1527 = vpop.f32.mrf.mxu0
    %v1528 = vpop.f32.mrf.mxu0
    %1529 = vdwg.mxu0
    %v1530 = vadd.f32 %v1482, %v1525
    %v1531 = vxor.u32 %v1530, 2147483648
    %v1532 = vmul.f32 %v1531, 1.442695
    %v1533 = vpow.pop %v1532
    %v1534 = vadd.f32 %v1533, 1.0
    %v1535 = vrcp.pop %v1534
    %v1536 = vmul.f32 1.0, %v1535
    %v1537 = vtanh.pop %v1530
    %v1538 = vmul.f32 %v1536, %v1358
    %1540 = vrot.lane.b32.xlu0 %v1537, 32
    %v1541 = vpop.permute.xlu0 %1540
    %v1543 = vmul.f32 %v1536, %v1541
    %1545 = vrot.lane.b32.xlu0 %v1543, 32
    %v1546 = vpop.permute.xlu0 %1545
    %v1548 = vadd.f32 %v1538, %v1546
    %v1549 = vtanh.pop %v1548
    %1551 = vrot.lane.b32.xlu0 %v1549, 32
    %v1552 = vpop.permute.xlu0 %1551
    %v1554 = vmul.f32 %v1536, %v1552
    %v1555 = vpack.c.bf16 %v1476, %v1476
    %1557 = vrot.lane.b32.xlu0 %v1555, 64
    %v1558 = vpop.permute.xlu0 %1557
    %v1560 = vsel %vm120, %v1558, 0
    %1562 = vmatprep.subr.bf16.mxu0 0
    %1563 = vmatpush1.bf16.msra.mxu0 0
    %1564 = vmatprep.subr.bf16.mxu0 0
    %1565 = vmatpush1.bf16.msra.mxu0 0
    %1566 = vmatprep.subr.bf16.mxu0 0
    %1567 = vmatpush1.bf16.msra.mxu0 0
    %1568 = vmatprep.subr.bf16.mxu0 0
    %1569 = vmatpush1.bf16.msra.mxu0 0
    %1570 = vmatprep.subr.bf16.mxu0 0
    %1571 = vmatpush1.bf16.msra.mxu0 0
    %1572 = vmatprep.subr.bf16.mxu0 0
    %1573 = vmatpush1.bf16.msra.mxu0 0
    %1574 = vmatprep.subr.bf16.mxu0 0
    %1575 = vmatpush1.bf16.msra.mxu0 %v400
    %1576 = vmatprep.subr.bf16.mxu0 0
    %1577 = vmatpush1.bf16.msra.mxu0 %v399
    %1578 = vmatprep.subr.bf16.mxu0 0
    %1579 = vmatpush2.bf16.msra.mxu0 0
    %1580 = vmatprep.subr.bf16.mxu0 0
    %1581 = vmatpush2.bf16.msra.mxu0 0
    %1582 = vmatprep.subr.bf16.mxu0 0
    %1583 = vmatpush2.bf16.msra.mxu0 0
    %1584 = vmatprep.subr.bf16.mxu0 0
    %1585 = vmatpush2.bf16.msra.mxu0 0
    %1586 = vmatprep.subr.bf16.mxu0 0
    %1587 = vmatpush2.bf16.msra.mxu0 0
    %1588 = vmatprep.subr.bf16.mxu0 0
    %1589 = vmatpush2.bf16.msra.mxu0 0
    %1590 = vmatprep.subr.bf16.mxu0 0
    %1591 = vmatpush2.bf16.msra.mxu0 0
    %1592 = vmatprep.subr.bf16.mxu0 0
    %1593 = vmatpush2.bf16.msra.mxu0 0
    %1594 = vmatprep.mubr.bf16.mxu0 0
    %1595 = vmatmul.mubr.bf16.gmra.mxu0 %v1560
    %v1596 = vpop.f32.mrf.mxu0
    %v1597 = vadd.f32 0.0, %v1596
    %v1598 = vpop.f32.mrf.mxu0
    %v1599 = vpop.f32.mrf.mxu0
    %v1600 = vpop.f32.mrf.mxu0
    %1601 = vdwg.mxu0
    %1602 = vmatprep.subr.bf16.mxu0 0
    %1603 = vmatpush1.bf16.msra.mxu0 0
    %1604 = vmatprep.subr.bf16.mxu0 0
    %1605 = vmatpush1.bf16.msra.mxu0 0
    %1606 = vmatprep.subr.bf16.mxu0 0
    %1607 = vmatpush1.bf16.msra.mxu0 0
    %1608 = vmatprep.subr.bf16.mxu0 0
    %1609 = vmatpush1.bf16.msra.mxu0 0
    %1610 = vmatprep.subr.bf16.mxu0 0
    %1611 = vmatpush1.bf16.msra.mxu0 0
    %1612 = vmatprep.subr.bf16.mxu0 0
    %1613 = vmatpush1.bf16.msra.mxu0 0
    %1614 = vmatprep.subr.bf16.mxu0 0
    %1615 = vmatpush1.bf16.msra.mxu0 %v455
    %1616 = vmatprep.subr.bf16.mxu0 0
    %1617 = vmatpush1.bf16.msra.mxu0 %v454
    %1618 = vmatprep.subr.bf16.mxu0 0
    %1619 = vmatpush2.bf16.msra.mxu0 0
    %1620 = vmatprep.subr.bf16.mxu0 0
    %1621 = vmatpush2.bf16.msra.mxu0 0
    %1622 = vmatprep.subr.bf16.mxu0 0
    %1623 = vmatpush2.bf16.msra.mxu0 0
    %1624 = vmatprep.subr.bf16.mxu0 0
    %1625 = vmatpush2.bf16.msra.mxu0 0
    %1626 = vmatprep.subr.bf16.mxu0 0
    %1627 = vmatpush2.bf16.msra.mxu0 0
    %1628 = vmatprep.subr.bf16.mxu0 0
    %1629 = vmatpush2.bf16.msra.mxu0 0
    %1630 = vmatprep.subr.bf16.mxu0 0
    %1631 = vmatpush2.bf16.msra.mxu0 0
    %1632 = vmatprep.subr.bf16.mxu0 0
    %1633 = vmatpush2.bf16.msra.mxu0 0
    %1634 = vmatprep.mubr.bf16.mxu0 0
    %1635 = vmatmul.mubr.bf16.gmra.mxu0 %v1488
    %v1636 = vpop.f32.mrf.mxu0
    %v1637 = vadd.f32 %v1597, %v1636
    %v1638 = vpop.f32.mrf.mxu0
    %v1639 = vpop.f32.mrf.mxu0
    %v1640 = vpop.f32.mrf.mxu0
    %1641 = vdwg.mxu0
    %v1642 = vadd.f32 %v1637, %v223
    %v1643 = vxor.u32 %v1642, 2147483648
    %v1644 = vmul.f32 %v1643, 1.442695
    %v1645 = vpow.pop %v1644
    %v1646 = vadd.f32 %v1645, 1.0
    %v1647 = vrcp.pop %v1646
    %v1648 = vmul.f32 1.0, %v1647
    %v1649 = vtanh.pop %v1642
    %v1650 = vmul.f32 %v1648, %v1470
    %1652 = vrot.lane.b32.xlu0 %v1649, 32
    %v1653 = vpop.permute.xlu0 %1652
    %v1655 = vmul.f32 %v1648, %v1653
    %1657 = vrot.lane.b32.xlu0 %v1655, 32
    %v1658 = vpop.permute.xlu0 %1657
    %v1660 = vadd.f32 %v1650, %v1658
    %v1661 = vtanh.pop %v1660
    %1663 = vrot.lane.b32.xlu0 %v1661, 32
    %v1664 = vpop.permute.xlu0 %1663
    %v1666 = vmul.f32 %v1648, %v1664
    %1668 = vrot.lane.b32.xlu0 %v1666, 64
    %v1669 = vpop.permute.xlu0 %1668
    %1671 = vst.msk [vmem:[#allocation3 + $0x30] sm:$0xff] %vm120, %v1669
    %v1672 = vpack.c.bf16 %v1554, %v1554
    %v1673 = vpack.c.bf16 %v1666, %v1666
    %1675 = vrot.lane.b32.xlu0 %v1673, 64
    %v1676 = vpop.permute.xlu0 %1675
    %v1678 = vsel %vm120, %v1676, 0
    %1680 = vmatprep.subr.bf16.mxu0 0
    %1681 = vmatpush1.bf16.msra.mxu0 0
    %1682 = vmatprep.subr.bf16.mxu0 0
    %1683 = vmatpush1.bf16.msra.mxu0 0
    %1684 = vmatprep.subr.bf16.mxu0 0
    %1685 = vmatpush1.bf16.msra.mxu0 0
    %1686 = vmatprep.subr.bf16.mxu0 0
    %1687 = vmatpush1.bf16.msra.mxu0 0
    %1688 = vmatprep.subr.bf16.mxu0 0
    %1689 = vmatpush1.bf16.msra.mxu0 0
    %1690 = vmatprep.subr.bf16.mxu0 0
    %1691 = vmatpush1.bf16.msra.mxu0 0
    %1692 = vmatprep.subr.bf16.mxu0 0
    %1693 = vmatpush1.bf16.msra.mxu0 %v400
    %1694 = vmatprep.subr.bf16.mxu0 0
    %1695 = vmatpush1.bf16.msra.mxu0 %v399
    %1696 = vmatprep.subr.bf16.mxu0 0
    %1697 = vmatpush2.bf16.msra.mxu0 0
    %1698 = vmatprep.subr.bf16.mxu0 0
    %1699 = vmatpush2.bf16.msra.mxu0 0
    %1700 = vmatprep.subr.bf16.mxu0 0
    %1701 = vmatpush2.bf16.msra.mxu0 0
    %1702 = vmatprep.subr.bf16.mxu0 0
    %1703 = vmatpush2.bf16.msra.mxu0 0
    %1704 = vmatprep.subr.bf16.mxu0 0
    %1705 = vmatpush2.bf16.msra.mxu0 0
    %1706 = vmatprep.subr.bf16.mxu0 0
    %1707 = vmatpush2.bf16.msra.mxu0 0
    %1708 = vmatprep.subr.bf16.mxu0 0
    %1709 = vmatpush2.bf16.msra.mxu0 0
    %1710 = vmatprep.subr.bf16.mxu0 0
    %1711 = vmatpush2.bf16.msra.mxu0 0
    %1712 = vmatprep.mubr.bf16.mxu0 0
    %1713 = vmatmul.mubr.bf16.gmra.mxu0 %v1678
    %v1714 = vpop.f32.mrf.mxu0
    %v1715 = vadd.f32 0.0, %v1714
    %v1716 = vpop.f32.mrf.mxu0
    %v1717 = vpop.f32.mrf.mxu0
    %v1718 = vpop.f32.mrf.mxu0
    %1719 = vdwg.mxu0
    %1721 = vrot.lane.b32.xlu0 %v1672, 64
    %v1722 = vpop.permute.xlu0 %1721
    %v1724 = vsel %vm120, %v1722, 0
    %1726 = vmatprep.subr.bf16.mxu0 0
    %1727 = vmatpush1.bf16.msra.mxu0 0
    %1728 = vmatprep.subr.bf16.mxu0 0
    %1729 = vmatpush1.bf16.msra.mxu0 0
    %1730 = vmatprep.subr.bf16.mxu0 0
    %1731 = vmatpush1.bf16.msra.mxu0 0
    %1732 = vmatprep.subr.bf16.mxu0 0
    %1733 = vmatpush1.bf16.msra.mxu0 0
    %1734 = vmatprep.subr.bf16.mxu0 0
    %1735 = vmatpush1.bf16.msra.mxu0 0
    %1736 = vmatprep.subr.bf16.mxu0 0
    %1737 = vmatpush1.bf16.msra.mxu0 0
    %1738 = vmatprep.subr.bf16.mxu0 0
    %1739 = vmatpush1.bf16.msra.mxu0 %v455
    %1740 = vmatprep.subr.bf16.mxu0 0
    %1741 = vmatpush1.bf16.msra.mxu0 %v454
    %1742 = vmatprep.subr.bf16.mxu0 0
    %1743 = vmatpush2.bf16.msra.mxu0 0
    %1744 = vmatprep.subr.bf16.mxu0 0
    %1745 = vmatpush2.bf16.msra.mxu0 0
    %1746 = vmatprep.subr.bf16.mxu0 0
    %1747 = vmatpush2.bf16.msra.mxu0 0
    %1748 = vmatprep.subr.bf16.mxu0 0
    %1749 = vmatpush2.bf16.msra.mxu0 0
    %1750 = vmatprep.subr.bf16.mxu0 0
    %1751 = vmatpush2.bf16.msra.mxu0 0
    %1752 = vmatprep.subr.bf16.mxu0 0
    %1753 = vmatpush2.bf16.msra.mxu0 0
    %1754 = vmatprep.subr.bf16.mxu0 0
    %1755 = vmatpush2.bf16.msra.mxu0 0
    %1756 = vmatprep.subr.bf16.mxu0 0
    %1757 = vmatpush2.bf16.msra.mxu0 0
    %1758 = vmatprep.mubr.bf16.mxu0 0
    %1759 = vmatmul.mubr.bf16.gmra.mxu0 %v1724
    %v1760 = vpop.f32.mrf.mxu0
    %v1761 = vadd.f32 %v1715, %v1760
    %v1762 = vpop.f32.mrf.mxu0
    %v1763 = vpop.f32.mrf.mxu0
    %v1764 = vpop.f32.mrf.mxu0
    %1765 = vdwg.mxu0
    %v1766 = vadd.f32 %v1761, %v223
    %v1767 = vxor.u32 %v1766, 2147483648
    %v1768 = vmul.f32 %v1767, 1.442695
    %v1769 = vpow.pop %v1768
    %v1770 = vadd.f32 %v1769, 1.0
    %v1771 = vrcp.pop %v1770
    %v1772 = vmul.f32 1.0, %v1771
    %v1773 = vtanh.pop %v1766
    %v1774 = vmul.f32 %v1772, %v1660
    %1776 = vrot.lane.b32.xlu0 %v1773, 32
    %v1777 = vpop.permute.xlu0 %1776
    %v1779 = vmul.f32 %v1772, %v1777
    %1781 = vrot.lane.b32.xlu0 %v1779, 32
    %v1782 = vpop.permute.xlu0 %1781
    %v1784 = vadd.f32 %v1774, %v1782
    %v1785 = vtanh.pop %v1784
    %1787 = vrot.lane.b32.xlu0 %v1785, 32
    %v1788 = vpop.permute.xlu0 %1787
    %v1790 = vmul.f32 %v1772, %v1788
    %1792 = vrot.lane.b32.xlu0 %v1790, 64
    %v1793 = vpop.permute.xlu0 %1792
    %1795 = vst.msk [vmem:[#allocation3 + $0x38] sm:$0xff] %vm120, %v1793
    %1797 = vrot.lane.b32.xlu0 %v1554, 64
    %v1798 = vpop.permute.xlu0 %1797
    %1800 = vst.msk [vmem:[#allocation10] sm:$0xff] %vm120, %v1798
    %1802 = vrot.lane.b32.xlu0 %v1548, 96
    %v1803 = vpop.permute.xlu0 %1802
    %1805 = vst.msk [vmem:[#allocation12] sm:$0xff] %vm120, %v1803
    %1806 = vst.msk [vmem:[%s226] sm:$0xff] %vm120, %v1793
    %1808 = vrot.lane.b32.xlu0 %v1784, 96
    %v1809 = vpop.permute.xlu0 %1808
    %1811 = vst.msk [vmem:[%s229] sm:$0xff] %vm120, %v1809
    %v1812 = vld [vmem:[#allocation3] sm:$0xff]
    %v1813 = vld [vmem:[#allocation3 + $0x8] sm:$0xff]
    %v1814 = vld [vmem:[#allocation3 + $0x10] sm:$0xff]
    %v1815 = vld [vmem:[#allocation3 + $0x18] sm:$0xff]
    %v1816 = vld [vmem:[#allocation3 + $0x20] sm:$0xff]
    %v1817 = vld [vmem:[#allocation3 + $0x28] sm:$0xff]
    %v1818 = vld [vmem:[#allocation3 + $0x30] sm:$0xff]
    %v1819 = vld [vmem:[#allocation3 + $0x38] sm:$0xff]
    %v1820 = vpack.c.bf16 %v1813, %v1812
    %v1821 = vpack.c.bf16 %v1815, %v1814
    %v1822 = vpack.c.bf16 %v1817, %v1816
    %v1823 = vpack.c.bf16 %v1819, %v1818
    %v1824 = vld [vmem:[%s7] sm:$0xf]
    %v1825 = vld [vmem:[%s7 + $0x4] sm:$0xf]
    %v1826 = vld [vmem:[%s7 + $0x8] sm:$0xf]
    %v1827 = vld [vmem:[%s7 + $0xc] sm:$0xf]
    %v1828 = vld [vmem:[%s8] sm:$0x1]
    %v1830 = vlaneseq
    %v1831 = vshrl.u32 %v1830, 7
    %v1832 = vsub.s32 0, %v1831
    %v1833 = vrot.slane %v1828, %v1832
    %v1839 = vunpack.c.l.b16 %v1824
    %v1840 = vunpack.c.l.b16 %v1825
    %v1841 = vunpack.c.l.b16 %v1826
    %v1842 = vunpack.c.l.b16 %v1827
    %v1843 = vpack.c.b16 %v1840, %v1839
    %v1844 = vpack.c.b16 %v1842, %v1841
    %v1848 = vsel %vm120, %v1820, 0
    %v1851 = vsel %vm120, %v1821, 0
    %v1854 = vsel %vm120, %v1822, 0
    %v1857 = vsel %vm120, %v1823, 0
    %1859 = vmatprep.subr.bf16.mxu0 0
    %1860 = vmatpush1.bf16.msra.mxu0 0
    %1861 = vmatprep.subr.bf16.mxu0 0
    %1862 = vmatpush1.bf16.msra.mxu0 0
    %1863 = vmatprep.subr.bf16.mxu0 0
    %1864 = vmatpush1.bf16.msra.mxu0 0
    %1865 = vmatprep.subr.bf16.mxu0 0
    %1866 = vmatpush1.bf16.msra.mxu0 0
    %1867 = vmatprep.subr.bf16.mxu0 0
    %1868 = vmatpush1.bf16.msra.mxu0 0
    %1869 = vmatprep.subr.bf16.mxu0 0
    %1870 = vmatpush1.bf16.msra.mxu0 0
    %1871 = vmatprep.subr.bf16.mxu0 0
    %1872 = vmatpush1.bf16.msra.mxu0 %v1844
    %1873 = vmatprep.subr.bf16.mxu0 0
    %1874 = vmatpush1.bf16.msra.mxu0 %v1843
    %1875 = vmatprep.subr.bf16.mxu0 0
    %1876 = vmatpush2.bf16.msra.mxu0 0
    %1877 = vmatprep.subr.bf16.mxu0 0
    %1878 = vmatpush2.bf16.msra.mxu0 0
    %1879 = vmatprep.subr.bf16.mxu0 0
    %1880 = vmatpush2.bf16.msra.mxu0 0
    %1881 = vmatprep.subr.bf16.mxu0 0
    %1882 = vmatpush2.bf16.msra.mxu0 0
    %1883 = vmatprep.subr.bf16.mxu0 0
    %1884 = vmatpush2.bf16.msra.mxu0 0
    %1885 = vmatprep.subr.bf16.mxu0 0
    %1886 = vmatpush2.bf16.msra.mxu0 0
    %1887 = vmatprep.subr.bf16.mxu0 0
    %1888 = vmatpush2.bf16.msra.mxu0 0
    %1889 = vmatprep.subr.bf16.mxu0 0
    %1890 = vmatpush2.bf16.msra.mxu0 0
    %1891 = vmatprep.mubr.bf16.mxu0 0
    %1892 = vmatmul.mubr.bf16.gmra.mxu0 %v1848
    %v1893 = vpop.f32.mrf.mxu0
    %v1894 = vadd.f32 %v1833, %v1893
    %v1895 = vpop.f32.mrf.mxu0
    %v1896 = vpop.f32.mrf.mxu0
    %v1897 = vadd.f32 %v1833, %v1896
    %v1898 = vpop.f32.mrf.mxu0
    %1899 = vmatprep.mubr.bf16.mxu0 0
    %1900 = vmatmul.mubr.bf16.gmra.mxu0 %v1851
    %v1901 = vpop.f32.mrf.mxu0
    %v1902 = vadd.f32 %v1833, %v1901
    %v1903 = vpop.f32.mrf.mxu0
    %v1904 = vpop.f32.mrf.mxu0
    %v1905 = vadd.f32 %v1833, %v1904
    %v1906 = vpop.f32.mrf.mxu0
    %1907 = vmatprep.mubr.bf16.mxu0 0
    %1908 = vmatmul.mubr.bf16.gmra.mxu0 %v1854
    %v1909 = vpop.f32.mrf.mxu0
    %v1910 = vadd.f32 %v1833, %v1909
    %v1911 = vpop.f32.mrf.mxu0
    %v1912 = vpop.f32.mrf.mxu0
    %v1913 = vadd.f32 %v1833, %v1912
    %v1914 = vpop.f32.mrf.mxu0
    %1915 = vmatprep.mubr.bf16.mxu0 0
    %1916 = vmatmul.mubr.bf16.gmra.mxu0 %v1857
    %v1917 = vpop.f32.mrf.mxu0
    %v1918 = vadd.f32 %v1833, %v1917
    %v1919 = vpop.f32.mrf.mxu0
    %v1920 = vpop.f32.mrf.mxu0
    %v1921 = vadd.f32 %v1833, %v1920
    %v1922 = vpop.f32.mrf.mxu0
    %1923 = vdwg.mxu0
    %1924 = vst [vmem:[#allocation9] sm:$0xff] %v1894
    %1925 = vst [vmem:[#allocation9 + $0x8] sm:$0xff] %v1897
    %1926 = vst [vmem:[#allocation9 + $0x10] sm:$0xff] %v1902
    %1927 = vst [vmem:[#allocation9 + $0x18] sm:$0xff] %v1905
    %1928 = vst [vmem:[#allocation9 + $0x20] sm:$0xff] %v1910
    %1929 = vst [vmem:[#allocation9 + $0x28] sm:$0xff] %v1913
    %1930 = vst [vmem:[#allocation9 + $0x30] sm:$0xff] %v1918
    %1931 = vst [vmem:[#allocation9 + $0x38] sm:$0xff] %v1921
    // Predicated region
    $region58: #{tpu_custom_call.1} parent=1 // pred_check
      _
    $region59: #{tpu_custom_call.1} parent=1 // pred_check_branch
      %1933 = sbr.rel (0) target = $region61
    $region60: #{tpu_custom_call.1} parent=1 // pred_region
      %s1935 = ssub.s32 1024, 1024
      %1936 = vsyncadd [#allocation6], %s1935
      %s1937 = sshll.u32 [#allocation9], 4
      %s1938 = int_to_ptr.vmem [resolvable:$true] %s1937
      %1943 = dma.vmem_to_hbm [thread:$0]  %s1938, 1024, %s11, [#allocation6], 128, 128, 8
    $region61: #{tpu_custom_call.1} parent=1 // pred_fallthru
      _
    // Predicated region
    $region62: #{tpu_custom_call.1} parent=1 // pred_check
      _
    $region63: #{tpu_custom_call.1} parent=1 // pred_check_branch
      %1945 = sbr.rel (0) target = $region65
    $region64: #{tpu_custom_call.1} parent=1 // pred_region
      %s1947 = ssub.s32 256, 256
      %1948 = vsyncadd [#allocation11], %s1947
      %s1949 = sshll.u32 [#allocation10], 4
      %s1950 = int_to_ptr.vmem [resolvable:$true] %s1949
      %1955 = dma.vmem_to_hbm [thread:$0]  %s1950, 256, %s12, [#allocation11], 128, 128, 8
    $region65: #{tpu_custom_call.1} parent=1 // pred_fallthru
      _
    // Predicated region
    $region66: #{tpu_custom_call.1} parent=1 // pred_check
      _
    $region67: #{tpu_custom_call.1} parent=1 // pred_check_branch
      %1957 = sbr.rel (0) target = $region69
    $region68: #{tpu_custom_call.1} parent=1 // pred_region
      %s1959 = ssub.s32 256, 256
      %1960 = vsyncadd [#allocation11], %s1959
      %s1961 = sshll.u32 [#allocation12], 4
      %s1962 = int_to_ptr.vmem [resolvable:$true] %s1961
      %1967 = dma.vmem_to_hbm [thread:$0]  %s1962, 256, %s13, [#allocation11], 128, 128, 8
    $region69: #{tpu_custom_call.1} parent=1 // pred_fallthru
      _
    // Predicated region
    $region70: #{tpu_custom_call.1} parent=1 // pred_check
      _
    $region71: #{tpu_custom_call.1} parent=1 // pred_check_branch
      %1969 = sbr.rel (0) target = $region73
    $region72: #{tpu_custom_call.1} parent=1 // pred_region
      %1970 = dma.done [#allocation6], 1024
    $region73: #{tpu_custom_call.1} parent=1 // pred_fallthru
      _
    // Predicated region
    $region74: #{tpu_custom_call.1} parent=1 // pred_check
      _
    $region75: #{tpu_custom_call.1} parent=1 // pred_check_branch
      %1972 = sbr.rel (0) target = $region77
    $region76: #{tpu_custom_call.1} parent=1 // pred_region
      %1973 = dma.done [#allocation11], 256
    $region77: #{tpu_custom_call.1} parent=1 // pred_fallthru
      _
    // Predicated region
    $region78: #{tpu_custom_call.1} parent=1 // pred_check
      _
    $region79: #{tpu_custom_call.1} parent=1 // pred_check_branch
      %1975 = sbr.rel (0) target = $region81
    $region80: #{tpu_custom_call.1} parent=1 // pred_region
      %1976 = dma.done [#allocation11], 256
    $region81: #{tpu_custom_call.1} parent=1 // pred_fallthru
      _
    %1977 = vsyncpa [#allocation5], 1
    %1978 = vsyncpa [#allocation8], 1
    %1979 = vsyncpa [#allocation6], 1
    %1980 = vsyncpa [#allocation11], 1

</llo_original>
